<compile_context>
chip_gen: v5e
topology: v5e:2x2
jax: 0.10.0
libtpu: 0.0.40
codegen_flags: <defaults>
</compile_context>

<pallas_src>
import jax
import jax.numpy as jnp
import numpy as np
from jax.experimental import pallas as pl
from jax.experimental.pallas import tpu as pltpu


def tree_lstm_kernel(
    left_ref, right_ref,      # scalar prefetch (SMEM): (N,) int32 child idx (-1 remapped to N)
    x_ref,                    # (N, DWT)   word||tag embedding per node
    wx_ref,                   # (DWT, 4H)  fused input weights [Wi|Wf|Wo|Wu]; Wu tag rows are zero
    wl_ref,                   # (H, 4H)    fused left-hidden weights
    wr_ref,                   # (H, 4H)    fused right-hidden weights
    b_ref,                    # (1, 4H)    fused bias
    c_out, h_out,             # outputs: (N+1, H); row N is the permanently-zero "no child" row
    xw_scr,                   # scratch:  (N, 4H) precomputed x-contribution + bias
):
    n_nodes = x_ref.shape[0]
    hidden = c_out.shape[1]

    # Zero the state buffers (in particular the padding row N used for missing children).
    c_out[...] = jnp.zeros_like(c_out)
    h_out[...] = jnp.zeros_like(h_out)

    # Recurrence-independent part for all nodes in one MXU matmul: x @ Wx + b.
    xw_scr[...] = (
        jnp.dot(x_ref[...], wx_ref[...], preferred_element_type=jnp.float32)
        + b_ref[...]
    )

    # Static lane mask: lanes [0, 3H) -> sigmoid (i, f, o); lanes [3H, 4H) -> tanh (u).
    lane = jax.lax.broadcasted_iota(jnp.int32, (1, 4 * hidden), 1)
    sig_mask = lane < 3 * hidden

    # Hoist loop-invariant weight loads out of the node loop.
    wl = wl_ref[...]
    wr = wr_ref[...]

    def body(n, carry):
        li = left_ref[n]
        ri = right_ref[n]

        left_h = h_out[pl.ds(li, 1), :]
        right_h = h_out[pl.ds(ri, 1), :]
        left_c = c_out[pl.ds(li, 1), :]
        right_c = c_out[pl.ds(ri, 1), :]

        pre = (
            xw_scr[pl.ds(n, 1), :]
            + jnp.dot(left_h, wl, preferred_element_type=jnp.float32)
            + jnp.dot(right_h, wr, preferred_element_type=jnp.float32)
        )  # (1, 4H) — one full vreg

        act = jnp.where(sig_mask, jax.nn.sigmoid(pre), jnp.tanh(pre))
        i = act[:, 0:hidden]
        f = act[:, hidden:2 * hidden]
        o = act[:, 2 * hidden:3 * hidden]
        u = act[:, 3 * hidden:4 * hidden]

        # Matches the reference exactly: same forget gate applied to both children.
        c = i * u + f * left_c + f * right_c
        h = o * jnp.tanh(c)

        c_out[pl.ds(n, 1), :] = c
        h_out[pl.ds(n, 1), :] = h
        return carry

    jax.lax.fori_loop(0, n_nodes, body, 0, unroll=True)


def tree_lstm_forward(left_idx, right_idx, x_wt, params):
    """left_idx/right_idx: (N,) int32 post-order child indices (-1 = no child).
    x_wt: (N, WD+TD) concatenated word||tag embeddings per node."""
    N, DWT = x_wt.shape
    H = params["bi"].shape[-1]
    WD = params["wu_x"].shape[0]

    # Remap "no child" (-1) to the permanently-zero padding row N (glue).
    left_r = jnp.where(left_idx < 0, N, left_idx).astype(jnp.int32)
    right_r = jnp.where(right_idx < 0, N, right_idx).astype(jnp.int32)

    # Fuse the 4 gate linears into single weight / bias slabs (glue).
    # Wu only sees the word embedding, so its tag-dim rows are zero-padded (exact).
    wu_x_pad = jnp.concatenate(
        [params["wu_x"], jnp.zeros((DWT - WD, H), jnp.float32)], axis=0
    )
    wx = jnp.concatenate(
        [params["wi_x"], params["wf_x"], params["wo_x"], wu_x_pad], axis=1
    )  # (DWT, 4H)
    wl = jnp.concatenate(
        [params["wi_l"], params["wf_l"], params["wo_l"], params["wu_l"]], axis=1
    )  # (H, 4H)
    wr = jnp.concatenate(
        [params["wi_r"], params["wf_r"], params["wo_r"], params["wu_r"]], axis=1
    )  # (H, 4H)
    b = jnp.concatenate(
        [params["bi"], params["bf"], params["bo"], params["bu"]], axis=1
    )  # (1, 4H)

    tensor_inputs = (x_wt, wx, wl, wr, b)

    def full_spec(arr):
        # Full-array block, resident for the single grid step.
        nd = arr.ndim
        return pl.BlockSpec(arr.shape, lambda i, l, r, _nd=nd: (0,) * _nd)

    c_pad, h_pad = pl.pallas_call(
        tree_lstm_kernel,
        out_shape=(
            jax.ShapeDtypeStruct((N + 1, H), jnp.float32),
            jax.ShapeDtypeStruct((N + 1, H), jnp.float32),
        ),
        grid_spec=pltpu.PrefetchScalarGridSpec(
            num_scalar_prefetch=2,
            grid=(1,),
            in_specs=[full_spec(a) for a in tensor_inputs],
            out_specs=(
                pl.BlockSpec((N + 1, H), lambda i, l, r: (0, 0)),
                pl.BlockSpec((N + 1, H), lambda i, l, r: (0, 0)),
            ),
            scratch_shapes=[pltpu.VMEM((N, 4 * H), jnp.float32)],
        ),
        compiler_params=pltpu.CompilerParams(
            dimension_semantics=("arbitrary",),
        ),
    )(left_r, right_r, *tensor_inputs)

    c_all = c_pad[:N, :]
    h_all = h_pad[:N, :]
    # outputs = post-order h's (torch.cat over (1,H) rows), final_state = root (c, h)
    return h_all, (c_all[-1:, :], h_all[-1:, :])


def reference_forward(left_idx, right_idx, x_wt, x_w, params):
    """Pure-numpy reference mirroring the PyTorch recursion (post-order loop)."""
    N = left_idx.shape[0]
    H = params["bi"].shape[-1]
    c_all = np.zeros((N, H), np.float32)
    h_all = np.zeros((N, H), np.float32)

    def sig(x):
        return 1.0 / (1.0 + np.exp(-x))

    for n in range(N):
        li, ri = int(left_idx[n]), int(right_idx[n])
        lh = h_all[li] if li >= 0 else np.zeros(H, np.float32)
        lc = c_all[li] if li >= 0 else np.zeros(H, np.float32)
        rh = h_all[ri] if ri >= 0 else np.zeros(H, np.float32)
        rc = c_all[ri] if ri >= 0 else np.zeros(H, np.float32)
        xwt = np.asarray(x_wt[n])
        xw = np.asarray(x_w[n])
        i = sig(xwt @ params["wi_x"] + lh @ params["wi_l"] + rh @ params["wi_r"] + params["bi"][0])
        f = sig(xwt @ params["wf_x"] + lh @ params["wf_l"] + rh @ params["wf_r"] + params["bf"][0])
        o = sig(xwt @ params["wo_x"] + lh @ params["wo_l"] + rh @ params["wo_r"] + params["bo"][0])
        u = np.tanh(xw @ params["wu_x"] + lh @ params["wu_l"] + rh @ params["wu_r"] + params["bu"][0])
        c = i * u + f * lc + f * rc
        h = o * np.tanh(c)
        c_all[n] = c
        h_all[n] = h
    return h_all, (c_all[-1:, :], h_all[-1:, :])


if __name__ == "__main__":
    # Module hyper-parameters (small, consistent with the nn.Module __init__).
    WORD_VOCAB = 50
    TAG_VOCAB = 10
    WORD_DIM = 16
    TAG_DIM = 8
    HIDDEN = 32
    DWT = WORD_DIM + TAG_DIM

    key = jax.random.PRNGKey(0)
    keys = jax.random.split(key, 12)

    # Embedding tables (deterministic init).
    word_table = jax.random.normal(keys[0], (WORD_VOCAB, WORD_DIM), jnp.float32) * 0.1
    tag_table = jax.random.normal(keys[1], (TAG_VOCAB, TAG_DIM), jnp.float32) * 0.1

    # Linear layers, stored as (in_features, hidden) = torch weight.T, then
    # split into [word||tag | left_h | right_h] (and [word | left_h | right_h] for u).
    def split3(w, d0):
        return w[:d0], w[d0:d0 + HIDDEN], w[d0 + HIDDEN:]

    w_ig = jax.random.normal(keys[2], (DWT + 2 * HIDDEN, HIDDEN), jnp.float32) * 0.1
    w_fg = jax.random.normal(keys[3], (DWT + 2 * HIDDEN, HIDDEN), jnp.float32) * 0.1
    w_og = jax.random.normal(keys[4], (DWT + 2 * HIDDEN, HIDDEN), jnp.float32) * 0.1
    w_u = jax.random.normal(keys[5], (WORD_DIM + 2 * HIDDEN, HIDDEN), jnp.float32) * 0.1

    wi_x, wi_l, wi_r = split3(w_ig, DWT)
    wf_x, wf_l, wf_r = split3(w_fg, DWT)
    wo_x, wo_l, wo_r = split3(w_og, DWT)
    wu_x, wu_l, wu_r = split3(w_u, WORD_DIM)

    params = dict(
        wi_x=wi_x, wf_x=wf_x, wo_x=wo_x, wu_x=wu_x,
        wi_l=wi_l, wf_l=wf_l, wo_l=wo_l, wu_l=wu_l,
        wi_r=wi_r, wf_r=wf_r, wo_r=wo_r, wu_r=wu_r,
        bi=jax.random.normal(keys[6], (1, HIDDEN), jnp.float32) * 0.1,
        bf=jax.random.normal(keys[7], (1, HIDDEN), jnp.float32) * 0.1,
        bo=jax.random.normal(keys[8], (1, HIDDEN), jnp.float32) * 0.1,
        bu=jax.random.normal(keys[9], (1, HIDDEN), jnp.float32) * 0.1,
    )

    # Synthetic full binary tree, post-order (children before parent), N = 7:
    #   leaves: 0,1,3,4   internals: 2=(0,1), 5=(3,4)   root: 6=(2,5)
    N = 7
    left_idx = jnp.array([-1, -1, 0, -1, -1, 3, 2], jnp.int32)
    right_idx = jnp.array([-1, -1, 1, -1, -1, 4, 5], jnp.int32)
    # Leaves carry a word id; internal nodes have word id -1 -> zero word embed.
    word_ids = jnp.array([7, 13, -1, 21, 34, -1, -1], jnp.int32)
    tag_ids = jnp.array([1, 2, 5, 1, 3, 6, 9], jnp.int32)

    # Embedding lookups (glue, plain JAX).
    word_emb = word_table[jnp.clip(word_ids, 0)] * (word_ids >= 0).astype(jnp.float32)[:, None]
    tag_emb = tag_table[tag_ids]
    x_wt = jnp.concatenate([word_emb, tag_emb], axis=1)   # (N, WD+TD)
    x_w = word_emb                                        # (N, WD), reference only

    outputs, (final_c, final_h) = jax.block_until_ready(
        tree_lstm_forward(left_idx, right_idx, x_wt, params)
    )

    ref_outputs, (ref_c, ref_h) = reference_forward(
        np.asarray(left_idx), np.asarray(right_idx),
        np.asarray(x_wt), np.asarray(x_w),
        {k: np.asarray(v) for k, v in params.items()},
    )

    np.testing.assert_allclose(np.asarray(outputs), ref_outputs, rtol=1e-5, atol=1e-5)
    np.testing.assert_allclose(np.asarray(final_c), ref_c, rtol=1e-5, atol=1e-5)
    np.testing.assert_allclose(np.asarray(final_h), ref_h, rtol=1e-5, atol=1e-5)

    print("KERNEL_OK")
</pallas_src>

<mosaic_0001>
module attributes {stable_mosaic.version = 11 : i64} {
  func.func @tree_lstm_kernel(%arg0: i32, %arg1: memref<7xi32, #tpu.memory_space<smem>>, %arg2: memref<7xi32, #tpu.memory_space<smem>>, %arg3: memref<7x24xf32, #tpu.memory_space<vmem>>, %arg4: memref<24x128xf32, #tpu.memory_space<vmem>>, %arg5: memref<32x128xf32, #tpu.memory_space<vmem>>, %arg6: memref<32x128xf32, #tpu.memory_space<vmem>>, %arg7: memref<1x128xf32, #tpu.memory_space<vmem>>, %arg8: memref<8x32xf32, #tpu.memory_space<vmem>>, %arg9: memref<8x32xf32, #tpu.memory_space<vmem>>, %arg10: memref<7x128xf32, #tpu.memory_space<vmem>>) attributes {dimension_semantics = [#tpu.dimension_semantics<arbitrary>], iteration_bounds = array<i64: 1>, scalar_prefetch = 2 : i64, scratch_operands = 1 : i64, tpu.core_type = #tpu.core_type<tc>, window_params = [{pipeline_mode = #tpu.pipeline_mode<synchronous>, transform_indices = @transform_0, window_bounds = array<i64: 7, 24>}, {pipeline_mode = #tpu.pipeline_mode<synchronous>, transform_indices = @transform_1, window_bounds = array<i64: 24, 128>}, {pipeline_mode = #tpu.pipeline_mode<synchronous>, transform_indices = @transform_2, window_bounds = array<i64: 32, 128>}, {pipeline_mode = #tpu.pipeline_mode<synchronous>, transform_indices = @transform_3, window_bounds = array<i64: 32, 128>}, {pipeline_mode = #tpu.pipeline_mode<synchronous>, transform_indices = @transform_4, window_bounds = array<i64: 1, 128>}, {pipeline_mode = #tpu.pipeline_mode<synchronous>, transform_indices = @transform_5, window_bounds = array<i64: 8, 32>}, {pipeline_mode = #tpu.pipeline_mode<synchronous>, transform_indices = @transform_6, window_bounds = array<i64: 8, 32>}]} {
    %cst = arith.constant 0.000000e+00 : f32
    %0 = vector.broadcast %cst : f32 to vector<8x32xf32>
    %c0 = arith.constant 0 : index
    %c0_0 = arith.constant 0 : index
    %1 = vector.load %arg8[%c0, %c0_0] : memref<8x32xf32, #tpu.memory_space<vmem>>, vector<8x32xf32>
    tpu.vector_store %arg8[%c0, %c0_0], %0 {strides = array<i32>} : memref<8x32xf32, #tpu.memory_space<vmem>>, vector<8x32xf32>,
    %cst_1 = arith.constant 0.000000e+00 : f32
    %2 = vector.broadcast %cst_1 : f32 to vector<8x32xf32>
    %c0_2 = arith.constant 0 : index
    %c0_3 = arith.constant 0 : index
    %3 = vector.load %arg9[%c0_2, %c0_3] : memref<8x32xf32, #tpu.memory_space<vmem>>, vector<8x32xf32>
    tpu.vector_store %arg9[%c0_2, %c0_3], %2 {strides = array<i32>} : memref<8x32xf32, #tpu.memory_space<vmem>>, vector<8x32xf32>,
    %c0_4 = arith.constant 0 : index
    %c0_5 = arith.constant 0 : index
    %4 = vector.load %arg3[%c0_4, %c0_5] : memref<7x24xf32, #tpu.memory_space<vmem>>, vector<7x24xf32>
    %c0_6 = arith.constant 0 : index
    %c0_7 = arith.constant 0 : index
    %5 = vector.load %arg4[%c0_6, %c0_7] : memref<24x128xf32, #tpu.memory_space<vmem>>, vector<24x128xf32>
    %cst_8 = arith.constant dense<0.000000e+00> : vector<7x128xf32>
    %6 = tpu.matmul %4, %5, %cst_8 {dimension_numbers = #tpu.dot_dimension_numbers<[1], [0], [0], [1], [0, 0, 1, 1], [], []>} : vector<7x24xf32>, vector<24x128xf32>, vector<7x128xf32> -> vector<7x128xf32>
    %c0_9 = arith.constant 0 : index
    %c0_10 = arith.constant 0 : index
    %7 = vector.load %arg7[%c0_9, %c0_10] : memref<1x128xf32, #tpu.memory_space<vmem>>, vector<1x128xf32>
    %8 = vector.broadcast %7 : vector<1x128xf32> to vector<7x128xf32>
    %9 = arith.addf %6, %8 : vector<7x128xf32>
    %c0_11 = arith.constant 0 : index
    %c0_12 = arith.constant 0 : index
    %10 = vector.load %arg10[%c0_11, %c0_12] : memref<7x128xf32, #tpu.memory_space<vmem>>, vector<7x128xf32>
    tpu.vector_store %arg10[%c0_11, %c0_12], %9 {strides = array<i32>} : memref<7x128xf32, #tpu.memory_space<vmem>>, vector<7x128xf32>,
    %11 = tpu.iota {dimensions = array<i32: 1>} : vector<1x128xi32>
    %c96_i32 = arith.constant 96 : i32
    %12 = vector.broadcast %c96_i32 : i32 to vector<1x128xi32>
    %13 = arith.cmpi slt, %11, %12 : vector<1x128xi32>
    %c0_13 = arith.constant 0 : index
    %c0_14 = arith.constant 0 : index
    %14 = vector.load %arg5[%c0_13, %c0_14] : memref<32x128xf32, #tpu.memory_space<vmem>>, vector<32x128xf32>
    %c0_15 = arith.constant 0 : index
    %c0_16 = arith.constant 0 : index
    %15 = vector.load %arg6[%c0_15, %c0_16] : memref<32x128xf32, #tpu.memory_space<vmem>>, vector<32x128xf32>
    %c0_i32 = arith.constant 0 : i32
    %16 = arith.index_cast %c0_i32 : i32 to index
    %17 = memref.load %arg1[%16] : memref<7xi32, #tpu.memory_space<smem>>
    %18 = arith.index_cast %c0_i32 : i32 to index
    %19 = memref.load %arg2[%18] : memref<7xi32, #tpu.memory_space<smem>>
    %20 = arith.index_cast %17 : i32 to index
    %c0_17 = arith.constant 0 : index
    %21 = vector.load %arg9[%20, %c0_17] : memref<8x32xf32, #tpu.memory_space<vmem>>, vector<1x32xf32>
    %22 = arith.index_cast %19 : i32 to index
    %c0_18 = arith.constant 0 : index
    %23 = vector.load %arg9[%22, %c0_18] : memref<8x32xf32, #tpu.memory_space<vmem>>, vector<1x32xf32>
    %24 = arith.index_cast %17 : i32 to index
    %c0_19 = arith.constant 0 : index
    %25 = vector.load %arg8[%24, %c0_19] : memref<8x32xf32, #tpu.memory_space<vmem>>, vector<1x32xf32>
    %26 = arith.index_cast %19 : i32 to index
    %c0_20 = arith.constant 0 : index
    %27 = vector.load %arg8[%26, %c0_20] : memref<8x32xf32, #tpu.memory_space<vmem>>, vector<1x32xf32>
    %28 = arith.index_cast %c0_i32 : i32 to index
    %c0_21 = arith.constant 0 : index
    %29 = vector.load %arg10[%28, %c0_21] : memref<7x128xf32, #tpu.memory_space<vmem>>, vector<1x128xf32>
    %cst_22 = arith.constant dense<0.000000e+00> : vector<1x128xf32>
    %30 = tpu.matmul %21, %14, %cst_22 {dimension_numbers = #tpu.dot_dimension_numbers<[1], [0], [0], [1], [0, 0, 1, 1], [], []>} : vector<1x32xf32>, vector<32x128xf32>, vector<1x128xf32> -> vector<1x128xf32>
    %31 = arith.addf %29, %30 : vector<1x128xf32>
    %cst_23 = arith.constant dense<0.000000e+00> : vector<1x128xf32>
    %32 = tpu.matmul %23, %15, %cst_23 {dimension_numbers = #tpu.dot_dimension_numbers<[1], [0], [0], [1], [0, 0, 1, 1], [], []>} : vector<1x32xf32>, vector<32x128xf32>, vector<1x128xf32> -> vector<1x128xf32>
    %33 = arith.addf %31, %32 : vector<1x128xf32>
    %34 = arith.negf %33 : vector<1x128xf32>
    %35 = math.exp %34 : vector<1x128xf32>
    %cst_24 = arith.constant 1.000000e+00 : f32
    %36 = vector.broadcast %cst_24 : f32 to vector<1x128xf32>
    %37 = arith.addf %36, %35 : vector<1x128xf32>
    %38 = arith.divf %36, %37 : vector<1x128xf32>
    %39 = math.tanh %33 : vector<1x128xf32>
    %40 = arith.select %13, %38, %39 : vector<1x128xi1>, vector<1x128xf32>
    %41 = vector.extract_strided_slice %40 {offsets = [0, 0], sizes = [1, 32], strides = [1, 1]} : vector<1x128xf32> to vector<1x32xf32>
    %42 = vector.extract_strided_slice %40 {offsets = [0, 32], sizes = [1, 32], strides = [1, 1]} : vector<1x128xf32> to vector<1x32xf32>
    %43 = vector.extract_strided_slice %40 {offsets = [0, 64], sizes = [1, 32], strides = [1, 1]} : vector<1x128xf32> to vector<1x32xf32>
    %44 = vector.extract_strided_slice %40 {offsets = [0, 96], sizes = [1, 32], strides = [1, 1]} : vector<1x128xf32> to vector<1x32xf32>
    %45 = arith.mulf %41, %44 : vector<1x32xf32>
    %46 = arith.mulf %42, %25 : vector<1x32xf32>
    %47 = arith.addf %45, %46 : vector<1x32xf32>
    %48 = arith.mulf %42, %27 : vector<1x32xf32>
    %49 = arith.addf %47, %48 : vector<1x32xf32>
    %50 = math.tanh %49 : vector<1x32xf32>
    %51 = arith.mulf %43, %50 : vector<1x32xf32>
    %52 = arith.index_cast %c0_i32 : i32 to index
    %c0_25 = arith.constant 0 : index
    %53 = vector.load %arg8[%52, %c0_25] : memref<8x32xf32, #tpu.memory_space<vmem>>, vector<1x32xf32>
    tpu.vector_store %arg8[%52, %c0_25], %49 {strides = array<i32>} : memref<8x32xf32, #tpu.memory_space<vmem>>, vector<1x32xf32>,
    %54 = arith.index_cast %c0_i32 : i32 to index
    %c0_26 = arith.constant 0 : index
    %55 = vector.load %arg9[%54, %c0_26] : memref<8x32xf32, #tpu.memory_space<vmem>>, vector<1x32xf32>
    tpu.vector_store %arg9[%54, %c0_26], %51 {strides = array<i32>} : memref<8x32xf32, #tpu.memory_space<vmem>>, vector<1x32xf32>,
    %c1_i32 = arith.constant 1 : i32
    %56 = arith.index_cast %c1_i32 : i32 to index
    %57 = memref.load %arg1[%56] : memref<7xi32, #tpu.memory_space<smem>>
    %58 = arith.index_cast %c1_i32 : i32 to index
    %59 = memref.load %arg2[%58] : memref<7xi32, #tpu.memory_space<smem>>
    %60 = arith.index_cast %57 : i32 to index
    %c0_27 = arith.constant 0 : index
    %61 = vector.load %arg9[%60, %c0_27] : memref<8x32xf32, #tpu.memory_space<vmem>>, vector<1x32xf32>
    %62 = arith.index_cast %59 : i32 to index
    %c0_28 = arith.constant 0 : index
    %63 = vector.load %arg9[%62, %c0_28] : memref<8x32xf32, #tpu.memory_space<vmem>>, vector<1x32xf32>
    %64 = arith.index_cast %57 : i32 to index
    %c0_29 = arith.constant 0 : index
    %65 = vector.load %arg8[%64, %c0_29] : memref<8x32xf32, #tpu.memory_space<vmem>>, vector<1x32xf32>
    %66 = arith.index_cast %59 : i32 to index
    %c0_30 = arith.constant 0 : index
    %67 = vector.load %arg8[%66, %c0_30] : memref<8x32xf32, #tpu.memory_space<vmem>>, vector<1x32xf32>
    %68 = arith.index_cast %c1_i32 : i32 to index
    %c0_31 = arith.constant 0 : index
    %69 = vector.load %arg10[%68, %c0_31] : memref<7x128xf32, #tpu.memory_space<vmem>>, vector<1x128xf32>
    %cst_32 = arith.constant dense<0.000000e+00> : vector<1x128xf32>
    %70 = tpu.matmul %61, %14, %cst_32 {dimension_numbers = #tpu.dot_dimension_numbers<[1], [0], [0], [1], [0, 0, 1, 1], [], []>} : vector<1x32xf32>, vector<32x128xf32>, vector<1x128xf32> -> vector<1x128xf32>
    %71 = arith.addf %69, %70 : vector<1x128xf32>
    %cst_33 = arith.constant dense<0.000000e+00> : vector<1x128xf32>
    %72 = tpu.matmul %63, %15, %cst_33 {dimension_numbers = #tpu.dot_dimension_numbers<[1], [0], [0], [1], [0, 0, 1, 1], [], []>} : vector<1x32xf32>, vector<32x128xf32>, vector<1x128xf32> -> vector<1x128xf32>
    %73 = arith.addf %71, %72 : vector<1x128xf32>
    %74 = arith.negf %73 : vector<1x128xf32>
    %75 = math.exp %74 : vector<1x128xf32>
    %cst_34 = arith.constant 1.000000e+00 : f32
    %76 = vector.broadcast %cst_34 : f32 to vector<1x128xf32>
    %77 = arith.addf %76, %75 : vector<1x128xf32>
    %78 = arith.divf %76, %77 : vector<1x128xf32>
    %79 = math.tanh %73 : vector<1x128xf32>
    %80 = arith.select %13, %78, %79 : vector<1x128xi1>, vector<1x128xf32>
    %81 = vector.extract_strided_slice %80 {offsets = [0, 0], sizes = [1, 32], strides = [1, 1]} : vector<1x128xf32> to vector<1x32xf32>
    %82 = vector.extract_strided_slice %80 {offsets = [0, 32], sizes = [1, 32], strides = [1, 1]} : vector<1x128xf32> to vector<1x32xf32>
    %83 = vector.extract_strided_slice %80 {offsets = [0, 64], sizes = [1, 32], strides = [1, 1]} : vector<1x128xf32> to vector<1x32xf32>
    %84 = vector.extract_strided_slice %80 {offsets = [0, 96], sizes = [1, 32], strides = [1, 1]} : vector<1x128xf32> to vector<1x32xf32>
    %85 = arith.mulf %81, %84 : vector<1x32xf32>
    %86 = arith.mulf %82, %65 : vector<1x32xf32>
    %87 = arith.addf %85, %86 : vector<1x32xf32>
    %88 = arith.mulf %82, %67 : vector<1x32xf32>
    %89 = arith.addf %87, %88 : vector<1x32xf32>
    %90 = math.tanh %89 : vector<1x32xf32>
    %91 = arith.mulf %83, %90 : vector<1x32xf32>
    %92 = arith.index_cast %c1_i32 : i32 to index
    %c0_35 = arith.constant 0 : index
    %93 = vector.load %arg8[%92, %c0_35] : memref<8x32xf32, #tpu.memory_space<vmem>>, vector<1x32xf32>
    tpu.vector_store %arg8[%92, %c0_35], %89 {strides = array<i32>} : memref<8x32xf32, #tpu.memory_space<vmem>>, vector<1x32xf32>,
    %94 = arith.index_cast %c1_i32 : i32 to index
    %c0_36 = arith.constant 0 : index
    %95 = vector.load %arg9[%94, %c0_36] : memref<8x32xf32, #tpu.memory_space<vmem>>, vector<1x32xf32>
    tpu.vector_store %arg9[%94, %c0_36], %91 {strides = array<i32>} : memref<8x32xf32, #tpu.memory_space<vmem>>, vector<1x32xf32>,
    %c2_i32 = arith.constant 2 : i32
    %96 = arith.index_cast %c2_i32 : i32 to index
    %97 = memref.load %arg1[%96] : memref<7xi32, #tpu.memory_space<smem>>
    %98 = arith.index_cast %c2_i32 : i32 to index
    %99 = memref.load %arg2[%98] : memref<7xi32, #tpu.memory_space<smem>>
    %100 = arith.index_cast %97 : i32 to index
    %c0_37 = arith.constant 0 : index
    %101 = vector.load %arg9[%100, %c0_37] : memref<8x32xf32, #tpu.memory_space<vmem>>, vector<1x32xf32>
    %102 = arith.index_cast %99 : i32 to index
    %c0_38 = arith.constant 0 : index
    %103 = vector.load %arg9[%102, %c0_38] : memref<8x32xf32, #tpu.memory_space<vmem>>, vector<1x32xf32>
    %104 = arith.index_cast %97 : i32 to index
    %c0_39 = arith.constant 0 : index
    %105 = vector.load %arg8[%104, %c0_39] : memref<8x32xf32, #tpu.memory_space<vmem>>, vector<1x32xf32>
    %106 = arith.index_cast %99 : i32 to index
    %c0_40 = arith.constant 0 : index
    %107 = vector.load %arg8[%106, %c0_40] : memref<8x32xf32, #tpu.memory_space<vmem>>, vector<1x32xf32>
    %108 = arith.index_cast %c2_i32 : i32 to index
    %c0_41 = arith.constant 0 : index
    %109 = vector.load %arg10[%108, %c0_41] : memref<7x128xf32, #tpu.memory_space<vmem>>, vector<1x128xf32>
    %cst_42 = arith.constant dense<0.000000e+00> : vector<1x128xf32>
    %110 = tpu.matmul %101, %14, %cst_42 {dimension_numbers = #tpu.dot_dimension_numbers<[1], [0], [0], [1], [0, 0, 1, 1], [], []>} : vector<1x32xf32>, vector<32x128xf32>, vector<1x128xf32> -> vector<1x128xf32>
    %111 = arith.addf %109, %110 : vector<1x128xf32>
    %cst_43 = arith.constant dense<0.000000e+00> : vector<1x128xf32>
    %112 = tpu.matmul %103, %15, %cst_43 {dimension_numbers = #tpu.dot_dimension_numbers<[1], [0], [0], [1], [0, 0, 1, 1], [], []>} : vector<1x32xf32>, vector<32x128xf32>, vector<1x128xf32> -> vector<1x128xf32>
    %113 = arith.addf %111, %112 : vector<1x128xf32>
    %114 = arith.negf %113 : vector<1x128xf32>
    %115 = math.exp %114 : vector<1x128xf32>
    %cst_44 = arith.constant 1.000000e+00 : f32
    %116 = vector.broadcast %cst_44 : f32 to vector<1x128xf32>
    %117 = arith.addf %116, %115 : vector<1x128xf32>
    %118 = arith.divf %116, %117 : vector<1x128xf32>
    %119 = math.tanh %113 : vector<1x128xf32>
    %120 = arith.select %13, %118, %119 : vector<1x128xi1>, vector<1x128xf32>
    %121 = vector.extract_strided_slice %120 {offsets = [0, 0], sizes = [1, 32], strides = [1, 1]} : vector<1x128xf32> to vector<1x32xf32>
    %122 = vector.extract_strided_slice %120 {offsets = [0, 32], sizes = [1, 32], strides = [1, 1]} : vector<1x128xf32> to vector<1x32xf32>
    %123 = vector.extract_strided_slice %120 {offsets = [0, 64], sizes = [1, 32], strides = [1, 1]} : vector<1x128xf32> to vector<1x32xf32>
    %124 = vector.extract_strided_slice %120 {offsets = [0, 96], sizes = [1, 32], strides = [1, 1]} : vector<1x128xf32> to vector<1x32xf32>
    %125 = arith.mulf %121, %124 : vector<1x32xf32>
    %126 = arith.mulf %122, %105 : vector<1x32xf32>
    %127 = arith.addf %125, %126 : vector<1x32xf32>
    %128 = arith.mulf %122, %107 : vector<1x32xf32>
    %129 = arith.addf %127, %128 : vector<1x32xf32>
    %130 = math.tanh %129 : vector<1x32xf32>
    %131 = arith.mulf %123, %130 : vector<1x32xf32>
    %132 = arith.index_cast %c2_i32 : i32 to index
    %c0_45 = arith.constant 0 : index
    %133 = vector.load %arg8[%132, %c0_45] : memref<8x32xf32, #tpu.memory_space<vmem>>, vector<1x32xf32>
    tpu.vector_store %arg8[%132, %c0_45], %129 {strides = array<i32>} : memref<8x32xf32, #tpu.memory_space<vmem>>, vector<1x32xf32>,
    %134 = arith.index_cast %c2_i32 : i32 to index
    %c0_46 = arith.constant 0 : index
    %135 = vector.load %arg9[%134, %c0_46] : memref<8x32xf32, #tpu.memory_space<vmem>>, vector<1x32xf32>
    tpu.vector_store %arg9[%134, %c0_46], %131 {strides = array<i32>} : memref<8x32xf32, #tpu.memory_space<vmem>>, vector<1x32xf32>,
    %c3_i32 = arith.constant 3 : i32
    %136 = arith.index_cast %c3_i32 : i32 to index
    %137 = memref.load %arg1[%136] : memref<7xi32, #tpu.memory_space<smem>>
    %138 = arith.index_cast %c3_i32 : i32 to index
    %139 = memref.load %arg2[%138] : memref<7xi32, #tpu.memory_space<smem>>
    %140 = arith.index_cast %137 : i32 to index
    %c0_47 = arith.constant 0 : index
    %141 = vector.load %arg9[%140, %c0_47] : memref<8x32xf32, #tpu.memory_space<vmem>>, vector<1x32xf32>
    %142 = arith.index_cast %139 : i32 to index
    %c0_48 = arith.constant 0 : index
    %143 = vector.load %arg9[%142, %c0_48] : memref<8x32xf32, #tpu.memory_space<vmem>>, vector<1x32xf32>
    %144 = arith.index_cast %137 : i32 to index
    %c0_49 = arith.constant 0 : index
    %145 = vector.load %arg8[%144, %c0_49] : memref<8x32xf32, #tpu.memory_space<vmem>>, vector<1x32xf32>
    %146 = arith.index_cast %139 : i32 to index
    %c0_50 = arith.constant 0 : index
    %147 = vector.load %arg8[%146, %c0_50] : memref<8x32xf32, #tpu.memory_space<vmem>>, vector<1x32xf32>
    %148 = arith.index_cast %c3_i32 : i32 to index
    %c0_51 = arith.constant 0 : index
    %149 = vector.load %arg10[%148, %c0_51] : memref<7x128xf32, #tpu.memory_space<vmem>>, vector<1x128xf32>
    %cst_52 = arith.constant dense<0.000000e+00> : vector<1x128xf32>
    %150 = tpu.matmul %141, %14, %cst_52 {dimension_numbers = #tpu.dot_dimension_numbers<[1], [0], [0], [1], [0, 0, 1, 1], [], []>} : vector<1x32xf32>, vector<32x128xf32>, vector<1x128xf32> -> vector<1x128xf32>
    %151 = arith.addf %149, %150 : vector<1x128xf32>
    %cst_53 = arith.constant dense<0.000000e+00> : vector<1x128xf32>
    %152 = tpu.matmul %143, %15, %cst_53 {dimension_numbers = #tpu.dot_dimension_numbers<[1], [0], [0], [1], [0, 0, 1, 1], [], []>} : vector<1x32xf32>, vector<32x128xf32>, vector<1x128xf32> -> vector<1x128xf32>
    %153 = arith.addf %151, %152 : vector<1x128xf32>
    %154 = arith.negf %153 : vector<1x128xf32>
    %155 = math.exp %154 : vector<1x128xf32>
    %cst_54 = arith.constant 1.000000e+00 : f32
    %156 = vector.broadcast %cst_54 : f32 to vector<1x128xf32>
    %157 = arith.addf %156, %155 : vector<1x128xf32>
    %158 = arith.divf %156, %157 : vector<1x128xf32>
    %159 = math.tanh %153 : vector<1x128xf32>
    %160 = arith.select %13, %158, %159 : vector<1x128xi1>, vector<1x128xf32>
    %161 = vector.extract_strided_slice %160 {offsets = [0, 0], sizes = [1, 32], strides = [1, 1]} : vector<1x128xf32> to vector<1x32xf32>
    %162 = vector.extract_strided_slice %160 {offsets = [0, 32], sizes = [1, 32], strides = [1, 1]} : vector<1x128xf32> to vector<1x32xf32>
    %163 = vector.extract_strided_slice %160 {offsets = [0, 64], sizes = [1, 32], strides = [1, 1]} : vector<1x128xf32> to vector<1x32xf32>
    %164 = vector.extract_strided_slice %160 {offsets = [0, 96], sizes = [1, 32], strides = [1, 1]} : vector<1x128xf32> to vector<1x32xf32>
    %165 = arith.mulf %161, %164 : vector<1x32xf32>
    %166 = arith.mulf %162, %145 : vector<1x32xf32>
    %167 = arith.addf %165, %166 : vector<1x32xf32>
    %168 = arith.mulf %162, %147 : vector<1x32xf32>
    %169 = arith.addf %167, %168 : vector<1x32xf32>
    %170 = math.tanh %169 : vector<1x32xf32>
    %171 = arith.mulf %163, %170 : vector<1x32xf32>
    %172 = arith.index_cast %c3_i32 : i32 to index
    %c0_55 = arith.constant 0 : index
    %173 = vector.load %arg8[%172, %c0_55] : memref<8x32xf32, #tpu.memory_space<vmem>>, vector<1x32xf32>
    tpu.vector_store %arg8[%172, %c0_55], %169 {strides = array<i32>} : memref<8x32xf32, #tpu.memory_space<vmem>>, vector<1x32xf32>,
    %174 = arith.index_cast %c3_i32 : i32 to index
    %c0_56 = arith.constant 0 : index
    %175 = vector.load %arg9[%174, %c0_56] : memref<8x32xf32, #tpu.memory_space<vmem>>, vector<1x32xf32>
    tpu.vector_store %arg9[%174, %c0_56], %171 {strides = array<i32>} : memref<8x32xf32, #tpu.memory_space<vmem>>, vector<1x32xf32>,
    %c4_i32 = arith.constant 4 : i32
    %176 = arith.index_cast %c4_i32 : i32 to index
    %177 = memref.load %arg1[%176] : memref<7xi32, #tpu.memory_space<smem>>
    %178 = arith.index_cast %c4_i32 : i32 to index
    %179 = memref.load %arg2[%178] : memref<7xi32, #tpu.memory_space<smem>>
    %180 = arith.index_cast %177 : i32 to index
    %c0_57 = arith.constant 0 : index
    %181 = vector.load %arg9[%180, %c0_57] : memref<8x32xf32, #tpu.memory_space<vmem>>, vector<1x32xf32>
    %182 = arith.index_cast %179 : i32 to index
    %c0_58 = arith.constant 0 : index
    %183 = vector.load %arg9[%182, %c0_58] : memref<8x32xf32, #tpu.memory_space<vmem>>, vector<1x32xf32>
    %184 = arith.index_cast %177 : i32 to index
    %c0_59 = arith.constant 0 : index
    %185 = vector.load %arg8[%184, %c0_59] : memref<8x32xf32, #tpu.memory_space<vmem>>, vector<1x32xf32>
    %186 = arith.index_cast %179 : i32 to index
    %c0_60 = arith.constant 0 : index
    %187 = vector.load %arg8[%186, %c0_60] : memref<8x32xf32, #tpu.memory_space<vmem>>, vector<1x32xf32>
    %188 = arith.index_cast %c4_i32 : i32 to index
    %c0_61 = arith.constant 0 : index
    %189 = vector.load %arg10[%188, %c0_61] : memref<7x128xf32, #tpu.memory_space<vmem>>, vector<1x128xf32>
    %cst_62 = arith.constant dense<0.000000e+00> : vector<1x128xf32>
    %190 = tpu.matmul %181, %14, %cst_62 {dimension_numbers = #tpu.dot_dimension_numbers<[1], [0], [0], [1], [0, 0, 1, 1], [], []>} : vector<1x32xf32>, vector<32x128xf32>, vector<1x128xf32> -> vector<1x128xf32>
    %191 = arith.addf %189, %190 : vector<1x128xf32>
    %cst_63 = arith.constant dense<0.000000e+00> : vector<1x128xf32>
    %192 = tpu.matmul %183, %15, %cst_63 {dimension_numbers = #tpu.dot_dimension_numbers<[1], [0], [0], [1], [0, 0, 1, 1], [], []>} : vector<1x32xf32>, vector<32x128xf32>, vector<1x128xf32> -> vector<1x128xf32>
    %193 = arith.addf %191, %192 : vector<1x128xf32>
    %194 = arith.negf %193 : vector<1x128xf32>
    %195 = math.exp %194 : vector<1x128xf32>
    %cst_64 = arith.constant 1.000000e+00 : f32
    %196 = vector.broadcast %cst_64 : f32 to vector<1x128xf32>
    %197 = arith.addf %196, %195 : vector<1x128xf32>
    %198 = arith.divf %196, %197 : vector<1x128xf32>
    %199 = math.tanh %193 : vector<1x128xf32>
    %200 = arith.select %13, %198, %199 : vector<1x128xi1>, vector<1x128xf32>
    %201 = vector.extract_strided_slice %200 {offsets = [0, 0], sizes = [1, 32], strides = [1, 1]} : vector<1x128xf32> to vector<1x32xf32>
    %202 = vector.extract_strided_slice %200 {offsets = [0, 32], sizes = [1, 32], strides = [1, 1]} : vector<1x128xf32> to vector<1x32xf32>
    %203 = vector.extract_strided_slice %200 {offsets = [0, 64], sizes = [1, 32], strides = [1, 1]} : vector<1x128xf32> to vector<1x32xf32>
    %204 = vector.extract_strided_slice %200 {offsets = [0, 96], sizes = [1, 32], strides = [1, 1]} : vector<1x128xf32> to vector<1x32xf32>
    %205 = arith.mulf %201, %204 : vector<1x32xf32>
    %206 = arith.mulf %202, %185 : vector<1x32xf32>
    %207 = arith.addf %205, %206 : vector<1x32xf32>
    %208 = arith.mulf %202, %187 : vector<1x32xf32>
    %209 = arith.addf %207, %208 : vector<1x32xf32>
    %210 = math.tanh %209 : vector<1x32xf32>
    %211 = arith.mulf %203, %210 : vector<1x32xf32>
    %212 = arith.index_cast %c4_i32 : i32 to index
    %c0_65 = arith.constant 0 : index
    %213 = vector.load %arg8[%212, %c0_65] : memref<8x32xf32, #tpu.memory_space<vmem>>, vector<1x32xf32>
    tpu.vector_store %arg8[%212, %c0_65], %209 {strides = array<i32>} : memref<8x32xf32, #tpu.memory_space<vmem>>, vector<1x32xf32>,
    %214 = arith.index_cast %c4_i32 : i32 to index
    %c0_66 = arith.constant 0 : index
    %215 = vector.load %arg9[%214, %c0_66] : memref<8x32xf32, #tpu.memory_space<vmem>>, vector<1x32xf32>
    tpu.vector_store %arg9[%214, %c0_66], %211 {strides = array<i32>} : memref<8x32xf32, #tpu.memory_space<vmem>>, vector<1x32xf32>,
    %c5_i32 = arith.constant 5 : i32
    %216 = arith.index_cast %c5_i32 : i32 to index
    %217 = memref.load %arg1[%216] : memref<7xi32, #tpu.memory_space<smem>>
    %218 = arith.index_cast %c5_i32 : i32 to index
    %219 = memref.load %arg2[%218] : memref<7xi32, #tpu.memory_space<smem>>
    %220 = arith.index_cast %217 : i32 to index
    %c0_67 = arith.constant 0 : index
    %221 = vector.load %arg9[%220, %c0_67] : memref<8x32xf32, #tpu.memory_space<vmem>>, vector<1x32xf32>
    %222 = arith.index_cast %219 : i32 to index
    %c0_68 = arith.constant 0 : index
    %223 = vector.load %arg9[%222, %c0_68] : memref<8x32xf32, #tpu.memory_space<vmem>>, vector<1x32xf32>
    %224 = arith.index_cast %217 : i32 to index
    %c0_69 = arith.constant 0 : index
    %225 = vector.load %arg8[%224, %c0_69] : memref<8x32xf32, #tpu.memory_space<vmem>>, vector<1x32xf32>
    %226 = arith.index_cast %219 : i32 to index
    %c0_70 = arith.constant 0 : index
    %227 = vector.load %arg8[%226, %c0_70] : memref<8x32xf32, #tpu.memory_space<vmem>>, vector<1x32xf32>
    %228 = arith.index_cast %c5_i32 : i32 to index
    %c0_71 = arith.constant 0 : index
    %229 = vector.load %arg10[%228, %c0_71] : memref<7x128xf32, #tpu.memory_space<vmem>>, vector<1x128xf32>
    %cst_72 = arith.constant dense<0.000000e+00> : vector<1x128xf32>
    %230 = tpu.matmul %221, %14, %cst_72 {dimension_numbers = #tpu.dot_dimension_numbers<[1], [0], [0], [1], [0, 0, 1, 1], [], []>} : vector<1x32xf32>, vector<32x128xf32>, vector<1x128xf32> -> vector<1x128xf32>
    %231 = arith.addf %229, %230 : vector<1x128xf32>
    %cst_73 = arith.constant dense<0.000000e+00> : vector<1x128xf32>
    %232 = tpu.matmul %223, %15, %cst_73 {dimension_numbers = #tpu.dot_dimension_numbers<[1], [0], [0], [1], [0, 0, 1, 1], [], []>} : vector<1x32xf32>, vector<32x128xf32>, vector<1x128xf32> -> vector<1x128xf32>
    %233 = arith.addf %231, %232 : vector<1x128xf32>
    %234 = arith.negf %233 : vector<1x128xf32>
    %235 = math.exp %234 : vector<1x128xf32>
    %cst_74 = arith.constant 1.000000e+00 : f32
    %236 = vector.broadcast %cst_74 : f32 to vector<1x128xf32>
    %237 = arith.addf %236, %235 : vector<1x128xf32>
    %238 = arith.divf %236, %237 : vector<1x128xf32>
    %239 = math.tanh %233 : vector<1x128xf32>
    %240 = arith.select %13, %238, %239 : vector<1x128xi1>, vector<1x128xf32>
    %241 = vector.extract_strided_slice %240 {offsets = [0, 0], sizes = [1, 32], strides = [1, 1]} : vector<1x128xf32> to vector<1x32xf32>
    %242 = vector.extract_strided_slice %240 {offsets = [0, 32], sizes = [1, 32], strides = [1, 1]} : vector<1x128xf32> to vector<1x32xf32>
    %243 = vector.extract_strided_slice %240 {offsets = [0, 64], sizes = [1, 32], strides = [1, 1]} : vector<1x128xf32> to vector<1x32xf32>
    %244 = vector.extract_strided_slice %240 {offsets = [0, 96], sizes = [1, 32], strides = [1, 1]} : vector<1x128xf32> to vector<1x32xf32>
    %245 = arith.mulf %241, %244 : vector<1x32xf32>
    %246 = arith.mulf %242, %225 : vector<1x32xf32>
    %247 = arith.addf %245, %246 : vector<1x32xf32>
    %248 = arith.mulf %242, %227 : vector<1x32xf32>
    %249 = arith.addf %247, %248 : vector<1x32xf32>
    %250 = math.tanh %249 : vector<1x32xf32>
    %251 = arith.mulf %243, %250 : vector<1x32xf32>
    %252 = arith.index_cast %c5_i32 : i32 to index
    %c0_75 = arith.constant 0 : index
    %253 = vector.load %arg8[%252, %c0_75] : memref<8x32xf32, #tpu.memory_space<vmem>>, vector<1x32xf32>
    tpu.vector_store %arg8[%252, %c0_75], %249 {strides = array<i32>} : memref<8x32xf32, #tpu.memory_space<vmem>>, vector<1x32xf32>,
    %254 = arith.index_cast %c5_i32 : i32 to index
    %c0_76 = arith.constant 0 : index
    %255 = vector.load %arg9[%254, %c0_76] : memref<8x32xf32, #tpu.memory_space<vmem>>, vector<1x32xf32>
    tpu.vector_store %arg9[%254, %c0_76], %251 {strides = array<i32>} : memref<8x32xf32, #tpu.memory_space<vmem>>, vector<1x32xf32>,
    %c6_i32 = arith.constant 6 : i32
    %256 = arith.index_cast %c6_i32 : i32 to index
    %257 = memref.load %arg1[%256] : memref<7xi32, #tpu.memory_space<smem>>
    %258 = arith.index_cast %c6_i32 : i32 to index
    %259 = memref.load %arg2[%258] : memref<7xi32, #tpu.memory_space<smem>>
    %260 = arith.index_cast %257 : i32 to index
    %c0_77 = arith.constant 0 : index
    %261 = vector.load %arg9[%260, %c0_77] : memref<8x32xf32, #tpu.memory_space<vmem>>, vector<1x32xf32>
    %262 = arith.index_cast %259 : i32 to index
    %c0_78 = arith.constant 0 : index
    %263 = vector.load %arg9[%262, %c0_78] : memref<8x32xf32, #tpu.memory_space<vmem>>, vector<1x32xf32>
    %264 = arith.index_cast %257 : i32 to index
    %c0_79 = arith.constant 0 : index
    %265 = vector.load %arg8[%264, %c0_79] : memref<8x32xf32, #tpu.memory_space<vmem>>, vector<1x32xf32>
    %266 = arith.index_cast %259 : i32 to index
    %c0_80 = arith.constant 0 : index
    %267 = vector.load %arg8[%266, %c0_80] : memref<8x32xf32, #tpu.memory_space<vmem>>, vector<1x32xf32>
    %268 = arith.index_cast %c6_i32 : i32 to index
    %c0_81 = arith.constant 0 : index
    %269 = vector.load %arg10[%268, %c0_81] : memref<7x128xf32, #tpu.memory_space<vmem>>, vector<1x128xf32>
    %cst_82 = arith.constant dense<0.000000e+00> : vector<1x128xf32>
    %270 = tpu.matmul %261, %14, %cst_82 {dimension_numbers = #tpu.dot_dimension_numbers<[1], [0], [0], [1], [0, 0, 1, 1], [], []>} : vector<1x32xf32>, vector<32x128xf32>, vector<1x128xf32> -> vector<1x128xf32>
    %271 = arith.addf %269, %270 : vector<1x128xf32>
    %cst_83 = arith.constant dense<0.000000e+00> : vector<1x128xf32>
    %272 = tpu.matmul %263, %15, %cst_83 {dimension_numbers = #tpu.dot_dimension_numbers<[1], [0], [0], [1], [0, 0, 1, 1], [], []>} : vector<1x32xf32>, vector<32x128xf32>, vector<1x128xf32> -> vector<1x128xf32>
    %273 = arith.addf %271, %272 : vector<1x128xf32>
    %274 = arith.negf %273 : vector<1x128xf32>
    %275 = math.exp %274 : vector<1x128xf32>
    %cst_84 = arith.constant 1.000000e+00 : f32
    %276 = vector.broadcast %cst_84 : f32 to vector<1x128xf32>
    %277 = arith.addf %276, %275 : vector<1x128xf32>
    %278 = arith.divf %276, %277 : vector<1x128xf32>
    %279 = math.tanh %273 : vector<1x128xf32>
    %280 = arith.select %13, %278, %279 : vector<1x128xi1>, vector<1x128xf32>
    %281 = vector.extract_strided_slice %280 {offsets = [0, 0], sizes = [1, 32], strides = [1, 1]} : vector<1x128xf32> to vector<1x32xf32>
    %282 = vector.extract_strided_slice %280 {offsets = [0, 32], sizes = [1, 32], strides = [1, 1]} : vector<1x128xf32> to vector<1x32xf32>
    %283 = vector.extract_strided_slice %280 {offsets = [0, 64], sizes = [1, 32], strides = [1, 1]} : vector<1x128xf32> to vector<1x32xf32>
    %284 = vector.extract_strided_slice %280 {offsets = [0, 96], sizes = [1, 32], strides = [1, 1]} : vector<1x128xf32> to vector<1x32xf32>
    %285 = arith.mulf %281, %284 : vector<1x32xf32>
    %286 = arith.mulf %282, %265 : vector<1x32xf32>
    %287 = arith.addf %285, %286 : vector<1x32xf32>
    %288 = arith.mulf %282, %267 : vector<1x32xf32>
    %289 = arith.addf %287, %288 : vector<1x32xf32>
    %290 = math.tanh %289 : vector<1x32xf32>
    %291 = arith.mulf %283, %290 : vector<1x32xf32>
    %292 = arith.index_cast %c6_i32 : i32 to index
    %c0_85 = arith.constant 0 : index
    %293 = vector.load %arg8[%292, %c0_85] : memref<8x32xf32, #tpu.memory_space<vmem>>, vector<1x32xf32>
    tpu.vector_store %arg8[%292, %c0_85], %289 {strides = array<i32>} : memref<8x32xf32, #tpu.memory_space<vmem>>, vector<1x32xf32>,
    %294 = arith.index_cast %c6_i32 : i32 to index
    %c0_86 = arith.constant 0 : index
    %295 = vector.load %arg9[%294, %c0_86] : memref<8x32xf32, #tpu.memory_space<vmem>>, vector<1x32xf32>
    tpu.vector_store %arg9[%294, %c0_86], %291 {strides = array<i32>} : memref<8x32xf32, #tpu.memory_space<vmem>>, vector<1x32xf32>,
    %c7_i32 = arith.constant 7 : i32
    return
  }
  func.func @transform_0(%arg0: i32, %arg1: memref<7xi32, #tpu.memory_space<smem>>, %arg2: memref<7xi32, #tpu.memory_space<smem>>) -> (i32, i32) {
    %c0_i32 = arith.constant 0 : i32
    %c0_i32_0 = arith.constant 0 : i32
    %c0_i32_1 = arith.constant 0 : i32
    return %c0_i32, %c0_i32_0 : i32, i32
  }
  func.func @transform_1(%arg0: i32, %arg1: memref<7xi32, #tpu.memory_space<smem>>, %arg2: memref<7xi32, #tpu.memory_space<smem>>) -> (i32, i32) {
    %c0_i32 = arith.constant 0 : i32
    %c0_i32_0 = arith.constant 0 : i32
    %c0_i32_1 = arith.constant 0 : i32
    return %c0_i32, %c0_i32_0 : i32, i32
  }
  func.func @transform_2(%arg0: i32, %arg1: memref<7xi32, #tpu.memory_space<smem>>, %arg2: memref<7xi32, #tpu.memory_space<smem>>) -> (i32, i32) {
    %c0_i32 = arith.constant 0 : i32
    %c0_i32_0 = arith.constant 0 : i32
    %c0_i32_1 = arith.constant 0 : i32
    return %c0_i32, %c0_i32_0 : i32, i32
  }
  func.func @transform_3(%arg0: i32, %arg1: memref<7xi32, #tpu.memory_space<smem>>, %arg2: memref<7xi32, #tpu.memory_space<smem>>) -> (i32, i32) {
    %c0_i32 = arith.constant 0 : i32
    %c0_i32_0 = arith.constant 0 : i32
    %c0_i32_1 = arith.constant 0 : i32
    return %c0_i32, %c0_i32_0 : i32, i32
  }
  func.func @transform_4(%arg0: i32, %arg1: memref<7xi32, #tpu.memory_space<smem>>, %arg2: memref<7xi32, #tpu.memory_space<smem>>) -> (i32, i32) {
    %c0_i32 = arith.constant 0 : i32
    %c0_i32_0 = arith.constant 0 : i32
    %c0_i32_1 = arith.constant 0 : i32
    return %c0_i32, %c0_i32_0 : i32, i32
  }
  func.func @transform_5(%arg0: i32, %arg1: memref<7xi32, #tpu.memory_space<smem>>, %arg2: memref<7xi32, #tpu.memory_space<smem>>) -> (i32, i32) {
    %c0_i32 = arith.constant 0 : i32
    %c0_i32_0 = arith.constant 0 : i32
    %c0_i32_1 = arith.constant 0 : i32
    return %c0_i32, %c0_i32_0 : i32, i32
  }
  func.func @transform_6(%arg0: i32, %arg1: memref<7xi32, #tpu.memory_space<smem>>, %arg2: memref<7xi32, #tpu.memory_space<smem>>) -> (i32, i32) {
    %c0_i32 = arith.constant 0 : i32
    %c0_i32_0 = arith.constant 0 : i32
    %c0_i32_1 = arith.constant 0 : i32
    return %c0_i32, %c0_i32_0 : i32, i32
  }
}

</mosaic_0001>

<llo_original>
// kernel: tpu_custom_call.1
$region0: #{tpu_custom_call.1}
  #allocation0 [shape = 'u32[]', space=smem, size = 0x4, offset = 0x4, fixed_abs, tag = 'smem constant byte address 0x4 - core index']
  #allocation1 [shape = 'u32[72,128]{1,0:T(1,128)}', space=vmem, size = 0x9000, scoped, tag = 'internal scratch']
  #allocation2 [shape = 'f32[7,128]{1,0:T(8,128)}', space=vmem, size = 0x1000, scoped, tag = 'scratch operand']
  #allocation3 [shape = 's32[1]{0}', space=sflag, size = 0x4, scoped, tag = 'scoped memory for tpu_custom_call.1']
  #allocation4 [shape = 'u8[512]{0}', space=smem, size = 0x200, scoped, tag = 'prefetched SMEM operand 0']
  #allocation5 [shape = 'u8[512]{0}', space=smem, size = 0x200, scoped, tag = 'prefetched SMEM operand 1']
  %s0 = inlined_call_operand.hbm [shape: s32[7], index: 0, kind: input, shape index: {}]
  %s1 = inlined_call_operand.hbm [shape: s32[7], index: 1, kind: input, shape index: {}]
  %s2 = inlined_call_operand.hbm [shape: f32[7,24], index: 2, kind: input, shape index: {}]
  %s3 = inlined_call_operand.hbm [shape: f32[24,128], index: 3, kind: input, shape index: {}]
  %s4 = inlined_call_operand.hbm [shape: f32[32,128], index: 4, kind: input, shape index: {}]
  %s5 = inlined_call_operand.hbm [shape: f32[32,128], index: 5, kind: input, shape index: {}]
  %s6 = inlined_call_operand.vmem [shape: f32[1,128], index: 6, kind: input, shape index: {}]
  %s7 = inlined_call_operand.hbm [shape: f32[8,32], index: 7, kind: output, shape index: {0}]
  %s8 = inlined_call_operand.hbm [shape: f32[8,32], index: 8, kind: output, shape index: {1}]
  %9 = xla_tuple %s7, %s8
  %s10 = sld [smem:[#allocation0]]
  $region54: #{tpu_custom_call.1} parent=0
    _
  %s12 = ssub.s32 1, %s10
  %s13 = scalar_select 0, %s12, %s10
  %s15 = sshll.u32 %s0, 4
  %s16 = int_to_ptr.hbm [resolvable:$true] %s15
  %18 = dma.hbm_to_smem %s16, 16, [#allocation4], [#allocation3]
  %s20 = sshll.u32 %s1, 4
  %s21 = int_to_ptr.hbm [resolvable:$true] %s20
  %23 = dma.hbm_to_smem %s21, 16, [#allocation5], [#allocation3]
  %25 = dma.done [#allocation3], 32
  %26 = sfence
  $region1: #{tpu_custom_call.1} parent=0
    #allocation6 [shape = 'u8[4096]{0}', space=vmem, size = 0x1000, scoped, tag = 'input window, operand 2, single buffered']
    #allocation7 [shape = 's32[1]{0}', space=sflag, size = 0x4, scoped, tag = 'scoped memory for tpu_custom_call.1']
    #allocation8 [shape = 's32[1]{0}', space=sflag, size = 0x4, scoped, tag = 'scoped memory for tpu_custom_call.1']
    #allocation9 [shape = 'u8[12288]{0}', space=vmem, size = 0x3000, scoped, tag = 'input window, operand 3, single buffered']
    #allocation10 [shape = 's32[1]{0}', space=sflag, size = 0x4, scoped, tag = 'scoped memory for tpu_custom_call.1']
    #allocation11 [shape = 'u8[16384]{0}', space=vmem, size = 0x4000, scoped, tag = 'input window, operand 4, single buffered']
    #allocation12 [shape = 'u8[16384]{0}', space=vmem, size = 0x4000, scoped, tag = 'input window, operand 5, single buffered']
    #allocation13 [shape = 's32[1]{0}', space=sflag, size = 0x4, scoped, tag = 'scoped memory for tpu_custom_call.1']
    #allocation14 [shape = 'u8[4096]{0}', space=vmem, size = 0x1000, scoped, tag = 'output window, operand 0, single buffered']
    #allocation15 [shape = 'u8[4096]{0}', space=vmem, size = 0x1000, scoped, tag = 'output window, operand 1, single buffered']
    #allocation16 [shape = 's32[1]{0}', space=sflag, size = 0x4, scoped, tag = 'scoped memory for tpu_custom_call.1']
    %27 = vsyncpa [#allocation7], 0
    %28 = vsyncpa [#allocation10], 0
    %29 = vsyncpa [#allocation13], 0
    %30 = vsyncpa [#allocation8], 0
    %31 = vsyncpa [#allocation16], 0
    // Predicated region
    $region2: #{tpu_custom_call.1} parent=1 // pred_check
      _
    $region3: #{tpu_custom_call.1} parent=1 // pred_check_branch
      %33 = sbr.rel (0) target = $region5
    $region4: #{tpu_custom_call.1} parent=1 // pred_region
      %35 = vsyncadd [#allocation7], 0
      %s37 = sshll.u32 %s2, 4
      %s38 = int_to_ptr.hbm [resolvable:$true] %s37
      %s39 = sshll.u32 [#allocation6], 4
      %s40 = int_to_ptr.vmem [resolvable:$true] %s39
      %42 = dma.hbm_to_vmem [thread:$0]  %s38, 128, %s40, [#allocation7]
    $region5: #{tpu_custom_call.1} parent=1 // pred_fallthru
      _
    // Predicated region
    $region6: #{tpu_custom_call.1} parent=1 // pred_check
      _
    $region7: #{tpu_custom_call.1} parent=1 // pred_check_branch
      %44 = sbr.rel (0) target = $region9
    $region8: #{tpu_custom_call.1} parent=1 // pred_region
      %46 = vsyncadd [#allocation10], 0
      %s47 = sshll.u32 %s3, 4
      %s48 = int_to_ptr.hbm [resolvable:$true] %s47
      %s49 = sshll.u32 [#allocation9], 4
      %s50 = int_to_ptr.vmem [resolvable:$true] %s49
      %55 = dma.hbm_to_vmem [thread:$0]  %s48, 384, %s50, [#allocation10], 128, 128, 8
    $region9: #{tpu_custom_call.1} parent=1 // pred_fallthru
      _
    // Predicated region
    $region10: #{tpu_custom_call.1} parent=1 // pred_check
      _
    $region11: #{tpu_custom_call.1} parent=1 // pred_check_branch
      %57 = sbr.rel (0) target = $region13
    $region12: #{tpu_custom_call.1} parent=1 // pred_region
      %59 = vsyncadd [#allocation10], 0
      %s60 = sshll.u32 %s4, 4
      %s61 = int_to_ptr.hbm [resolvable:$true] %s60
      %s62 = sshll.u32 [#allocation11], 4
      %s63 = int_to_ptr.vmem [resolvable:$true] %s62
      %68 = dma.hbm_to_vmem [thread:$0]  %s61, 512, %s63, [#allocation10], 128, 128, 8
    $region13: #{tpu_custom_call.1} parent=1 // pred_fallthru
      _
    // Predicated region
    $region14: #{tpu_custom_call.1} parent=1 // pred_check
      _
    $region15: #{tpu_custom_call.1} parent=1 // pred_check_branch
      %70 = sbr.rel (0) target = $region17
    $region16: #{tpu_custom_call.1} parent=1 // pred_region
      %72 = vsyncadd [#allocation13], 0
      %s73 = sshll.u32 %s5, 4
      %s74 = int_to_ptr.hbm [resolvable:$true] %s73
      %s75 = sshll.u32 [#allocation12], 4
      %s76 = int_to_ptr.vmem [resolvable:$true] %s75
      %81 = dma.hbm_to_vmem [thread:$0]  %s74, 512, %s76, [#allocation13], 128, 128, 8
    $region17: #{tpu_custom_call.1} parent=1 // pred_fallthru
      _
    // Predicated region
    $region18: #{tpu_custom_call.1} parent=1 // pred_check
      _
    $region19: #{tpu_custom_call.1} parent=1 // pred_check_branch
      %83 = sbr.rel (0) target = $region21
    $region20: #{tpu_custom_call.1} parent=1 // pred_region
      _
    $region21: #{tpu_custom_call.1} parent=1 // pred_fallthru
      _
    // Predicated region
    $region22: #{tpu_custom_call.1} parent=1 // pred_check
      _
    $region23: #{tpu_custom_call.1} parent=1 // pred_check_branch
      %85 = sbr.rel (0) target = $region25
    $region24: #{tpu_custom_call.1} parent=1 // pred_region
      %87 = dma.done [#allocation7], 128
    $region25: #{tpu_custom_call.1} parent=1 // pred_fallthru
      _
    // Predicated region
    $region26: #{tpu_custom_call.1} parent=1 // pred_check
      _
    $region27: #{tpu_custom_call.1} parent=1 // pred_check_branch
      %89 = sbr.rel (0) target = $region29
    $region28: #{tpu_custom_call.1} parent=1 // pred_region
      %91 = dma.done [#allocation10], 384
    $region29: #{tpu_custom_call.1} parent=1 // pred_fallthru
      _
    // Predicated region
    $region30: #{tpu_custom_call.1} parent=1 // pred_check
      _
    $region31: #{tpu_custom_call.1} parent=1 // pred_check_branch
      %93 = sbr.rel (0) target = $region33
    $region32: #{tpu_custom_call.1} parent=1 // pred_region
      %95 = dma.done [#allocation10], 512
    $region33: #{tpu_custom_call.1} parent=1 // pred_fallthru
      _
    // Predicated region
    $region34: #{tpu_custom_call.1} parent=1 // pred_check
      _
    $region35: #{tpu_custom_call.1} parent=1 // pred_check_branch
      %97 = sbr.rel (0) target = $region37
    $region36: #{tpu_custom_call.1} parent=1 // pred_region
      %99 = dma.done [#allocation13], 512
    $region37: #{tpu_custom_call.1} parent=1 // pred_fallthru
      _
    %vm100 = vcmask 261120
    %101 = vst.msk [vmem:[#allocation14] sm:$0xff] %vm100, 0.0
    %102 = vst.msk [vmem:[#allocation15] sm:$0xff] %vm100, 0.0
    %v103 = vld [vmem:[#allocation6] sm:$0x7f]
    %v104 = vld [vmem:[#allocation9] sm:$0xff]
    %v105 = vld [vmem:[#allocation9 + $0x8] sm:$0xff]
    %v106 = vld [vmem:[#allocation9 + $0x10] sm:$0xff]
    %v107 = vld [vmem:[%s6] sm:$0x1]
    %v109 = vperm.slane %v107, 0
    %vm111 = vcmask 195584
    %v113 = vsel %vm111, %v103, 0
    %115 = vmatpush.msra.mxu0 0.0
    %116 = vmatpush.msra.mxu0 0.0
    %117 = vmatpush.msra.mxu0 0.0
    %118 = vmatpush.msra.mxu0 0.0
    %119 = vmatpush.msra.mxu0 0.0
    %120 = vmatpush.msra.mxu0 0.0
    %121 = vmatpush.msra.mxu0 0.0
    %122 = vmatpush.msra.mxu0 0.0
    %123 = vmatpush.msra.mxu0 0.0
    %124 = vmatpush.msra.mxu0 0.0
    %125 = vmatpush.msra.mxu0 0.0
    %126 = vmatpush.msra.mxu0 0.0
    %127 = vmatpush.msra.mxu0 0.0
    %128 = vmatpush.msra.mxu0 %v106
    %129 = vmatpush.msra.mxu0 %v105
    %130 = vmatpush.msra.mxu0 %v104
    %131 = vmatmul.f32.gmra.mxu0 %v113
    %v132 = vpop.f32.mrf.mxu0
    %v133 = vadd.f32 %v109, %v132
    %134 = vdwg.mxu0
    %135 = vst [vmem:[#allocation2] sm:$0x7f] %v133
    %v136 = vlaneseq
    %v137 = vand.u32 %v136, 127
    %vm138 = vcmp.lt.s32.totalorder %v137, 96
    %v139 = vld [vmem:[#allocation11] sm:$0xff]
    %v140 = vld [vmem:[#allocation11 + $0x8] sm:$0xff]
    %v141 = vld [vmem:[#allocation11 + $0x10] sm:$0xff]
    %v142 = vld [vmem:[#allocation11 + $0x18] sm:$0xff]
    %v143 = vld [vmem:[#allocation12] sm:$0xff]
    %v144 = vld [vmem:[#allocation12 + $0x8] sm:$0xff]
    %v145 = vld [vmem:[#allocation12 + $0x10] sm:$0xff]
    %v146 = vld [vmem:[#allocation12 + $0x18] sm:$0xff]
    %s147 = sld [smem:[#allocation4]]
    %s148 = sld [smem:[#allocation5]]
    %s149 = scalar_lea.vmem [#allocation15], %s147
    %v150 = vld [vmem:[%s149] sm:$0x1]
    %s151 = scalar_lea.vmem [#allocation15], %s148
    %v152 = vld [vmem:[%s151] sm:$0x1]
    %s153 = scalar_lea.vmem [#allocation14], %s147
    %v154 = vld [vmem:[%s153] sm:$0x1]
    %s155 = scalar_lea.vmem [#allocation14], %s148
    %v156 = vld [vmem:[%s155] sm:$0x1]
    %v157 = vld [vmem:[#allocation2] sm:$0x1]
    %v159 = vsel %vm100, %v150, 0
    %161 = vmatpush.msra.mxu0 0.0
    %162 = vmatpush.msra.mxu0 0.0
    %163 = vmatpush.msra.mxu0 0.0
    %164 = vmatpush.msra.mxu0 0.0
    %165 = vmatpush.msra.mxu0 0.0
    %166 = vmatpush.msra.mxu0 0.0
    %167 = vmatpush.msra.mxu0 0.0
    %168 = vmatpush.msra.mxu0 0.0
    %169 = vmatpush.msra.mxu0 0.0
    %170 = vmatpush.msra.mxu0 0.0
    %171 = vmatpush.msra.mxu0 0.0
    %172 = vmatpush.msra.mxu0 0.0
    %173 = vmatpush.msra.mxu0 %v142
    %174 = vmatpush.msra.mxu0 %v141
    %175 = vmatpush.msra.mxu0 %v140
    %176 = vmatpush.msra.mxu0 %v139
    %177 = vmatmul.f32.gmra.mxu0 %v159
    %v178 = vpop.f32.mrf.mxu0
    %v179 = vadd.f32 0.0, %v178
    %180 = vdwg.mxu0
    %v181 = vadd.f32 %v157, %v179
    %v183 = vsel %vm100, %v152, 0
    %185 = vmatpush.msra.mxu0 0.0
    %186 = vmatpush.msra.mxu0 0.0
    %187 = vmatpush.msra.mxu0 0.0
    %188 = vmatpush.msra.mxu0 0.0
    %189 = vmatpush.msra.mxu0 0.0
    %190 = vmatpush.msra.mxu0 0.0
    %191 = vmatpush.msra.mxu0 0.0
    %192 = vmatpush.msra.mxu0 0.0
    %193 = vmatpush.msra.mxu0 0.0
    %194 = vmatpush.msra.mxu0 0.0
    %195 = vmatpush.msra.mxu0 0.0
    %196 = vmatpush.msra.mxu0 0.0
    %197 = vmatpush.msra.mxu0 %v146
    %198 = vmatpush.msra.mxu0 %v145
    %199 = vmatpush.msra.mxu0 %v144
    %200 = vmatpush.msra.mxu0 %v143
    %201 = vmatmul.f32.gmra.mxu0 %v183
    %v202 = vpop.f32.mrf.mxu0
    %v203 = vadd.f32 0.0, %v202
    %204 = vdwg.mxu0
    %v205 = vadd.f32 %v181, %v203
    %v206 = vxor.u32 %v205, 2147483648
    %v207 = vmul.f32 %v206, 1.442695
    %v208 = vpow.pop %v207
    %v209 = vadd.f32 %v208, 1.0
    %v210 = vrcp.pop %v209
    %v211 = vmul.f32 %v209, %v210
    %v212 = vsub.f32 1.0, %v211
    %v213 = vmul.f32 %v210, %v212
    %v214 = vadd.f32 %v210, %v213
    %vm215 = vweird.f32 %v209
    %vm216 = vweird.f32 %v210
    %vm217 = vmor %vm215, %vm216
    %v218 = vsel %vm217, %v210, %v214
    %v219 = vand.u32 2147483647, %v209
    %vm220 = vcmp.eq.f32.partialorder %v219, 8.507059e+37
    %v221 = vand.u32 %v209, 2147483648
    %v222 = vor.u32 1.1754944e-38, %v221
    %v223 = vsel %vm220, %v222, %v218
    %v224 = vmul.f32 1.0, %v223
    %v225 = vtanh.pop %v205
    %v226 = vsel %vm138, %v224, %v225
    %228 = vrot.lane.b32.xlu0 %v226, 32
    %v229 = vpop.permute.xlu0 %228
    %v231 = vmul.f32 %v226, %v229
    %233 = vrot.lane.b32.xlu0 %v154, 32
    %v234 = vpop.permute.xlu0 %233
    %v236 = vmul.f32 %v226, %v234
    %238 = vrot.lane.b32.xlu0 %v236, 96
    %v239 = vpop.permute.xlu0 %238
    %v241 = vadd.f32 %v231, %v239
    %243 = vrot.lane.b32.xlu0 %v156, 32
    %v244 = vpop.permute.xlu0 %243
    %v246 = vmul.f32 %v226, %v244
    %248 = vrot.lane.b32.xlu0 %v246, 96
    %v249 = vpop.permute.xlu0 %248
    %v251 = vadd.f32 %v241, %v249
    %v252 = vtanh.pop %v251
    %254 = vrot.lane.b32.xlu0 %v252, 64
    %v255 = vpop.permute.xlu0 %254
    %v257 = vmul.f32 %v226, %v255
    %vm258 = vcmask 253952
    %259 = vst.msk [vmem:[#allocation14] sm:$0x1] %vm258, %v251
    %261 = vrot.lane.b32.xlu0 %v257, 64
    %v262 = vpop.permute.xlu0 %261
    %264 = vst.msk [vmem:[#allocation15] sm:$0x1] %vm258, %v262
    %s265 = sld [smem:[#allocation4 + $0x1]]
    %s266 = sld [smem:[#allocation5 + $0x1]]
    %s267 = scalar_lea.vmem [#allocation15], %s265
    %v268 = vld [vmem:[%s267] sm:$0x1]
    %s269 = scalar_lea.vmem [#allocation15], %s266
    %v270 = vld [vmem:[%s269] sm:$0x1]
    %s271 = scalar_lea.vmem [#allocation14], %s265
    %v272 = vld [vmem:[%s271] sm:$0x1]
    %s273 = scalar_lea.vmem [#allocation14], %s266
    %v274 = vld [vmem:[%s273] sm:$0x1]
    %v275 = vld [vmem:[#allocation2 + $0x1] sm:$0x1]
    %v277 = vsel %vm100, %v268, 0
    %279 = vmatpush.msra.mxu0 0.0
    %280 = vmatpush.msra.mxu0 0.0
    %281 = vmatpush.msra.mxu0 0.0
    %282 = vmatpush.msra.mxu0 0.0
    %283 = vmatpush.msra.mxu0 0.0
    %284 = vmatpush.msra.mxu0 0.0
    %285 = vmatpush.msra.mxu0 0.0
    %286 = vmatpush.msra.mxu0 0.0
    %287 = vmatpush.msra.mxu0 0.0
    %288 = vmatpush.msra.mxu0 0.0
    %289 = vmatpush.msra.mxu0 0.0
    %290 = vmatpush.msra.mxu0 0.0
    %291 = vmatpush.msra.mxu0 %v142
    %292 = vmatpush.msra.mxu0 %v141
    %293 = vmatpush.msra.mxu0 %v140
    %294 = vmatpush.msra.mxu0 %v139
    %295 = vmatmul.f32.gmra.mxu0 %v277
    %v296 = vpop.f32.mrf.mxu0
    %v297 = vadd.f32 0.0, %v296
    %298 = vdwg.mxu0
    %v299 = vadd.f32 %v275, %v297
    %v301 = vsel %vm100, %v270, 0
    %303 = vmatpush.msra.mxu0 0.0
    %304 = vmatpush.msra.mxu0 0.0
    %305 = vmatpush.msra.mxu0 0.0
    %306 = vmatpush.msra.mxu0 0.0
    %307 = vmatpush.msra.mxu0 0.0
    %308 = vmatpush.msra.mxu0 0.0
    %309 = vmatpush.msra.mxu0 0.0
    %310 = vmatpush.msra.mxu0 0.0
    %311 = vmatpush.msra.mxu0 0.0
    %312 = vmatpush.msra.mxu0 0.0
    %313 = vmatpush.msra.mxu0 0.0
    %314 = vmatpush.msra.mxu0 0.0
    %315 = vmatpush.msra.mxu0 %v146
    %316 = vmatpush.msra.mxu0 %v145
    %317 = vmatpush.msra.mxu0 %v144
    %318 = vmatpush.msra.mxu0 %v143
    %319 = vmatmul.f32.gmra.mxu0 %v301
    %v320 = vpop.f32.mrf.mxu0
    %v321 = vadd.f32 0.0, %v320
    %322 = vdwg.mxu0
    %v323 = vadd.f32 %v299, %v321
    %v324 = vxor.u32 %v323, 2147483648
    %v325 = vmul.f32 %v324, 1.442695
    %v326 = vpow.pop %v325
    %v327 = vadd.f32 %v326, 1.0
    %v328 = vrcp.pop %v327
    %v329 = vmul.f32 %v327, %v328
    %v330 = vsub.f32 1.0, %v329
    %v331 = vmul.f32 %v328, %v330
    %v332 = vadd.f32 %v328, %v331
    %vm333 = vweird.f32 %v327
    %vm334 = vweird.f32 %v328
    %vm335 = vmor %vm333, %vm334
    %v336 = vsel %vm335, %v328, %v332
    %v337 = vand.u32 2147483647, %v327
    %vm338 = vcmp.eq.f32.partialorder %v337, 8.507059e+37
    %v339 = vand.u32 %v327, 2147483648
    %v340 = vor.u32 1.1754944e-38, %v339
    %v341 = vsel %vm338, %v340, %v336
    %v342 = vmul.f32 1.0, %v341
    %v343 = vtanh.pop %v323
    %v344 = vsel %vm138, %v342, %v343
    %346 = vrot.lane.b32.xlu0 %v344, 32
    %v347 = vpop.permute.xlu0 %346
    %v349 = vmul.f32 %v344, %v347
    %351 = vrot.lane.b32.xlu0 %v272, 32
    %v352 = vpop.permute.xlu0 %351
    %v354 = vmul.f32 %v344, %v352
    %356 = vrot.lane.b32.xlu0 %v354, 96
    %v357 = vpop.permute.xlu0 %356
    %v359 = vadd.f32 %v349, %v357
    %361 = vrot.lane.b32.xlu0 %v274, 32
    %v362 = vpop.permute.xlu0 %361
    %v364 = vmul.f32 %v344, %v362
    %366 = vrot.lane.b32.xlu0 %v364, 96
    %v367 = vpop.permute.xlu0 %366
    %v369 = vadd.f32 %v359, %v367
    %v370 = vtanh.pop %v369
    %372 = vrot.lane.b32.xlu0 %v370, 64
    %v373 = vpop.permute.xlu0 %372
    %v375 = vmul.f32 %v344, %v373
    %376 = vst.msk [vmem:[#allocation14 + $0x1] sm:$0x1] %vm258, %v369
    %378 = vrot.lane.b32.xlu0 %v375, 64
    %v379 = vpop.permute.xlu0 %378
    %381 = vst.msk [vmem:[#allocation15 + $0x1] sm:$0x1] %vm258, %v379
    %s382 = sld [smem:[#allocation4 + $0x2]]
    %s383 = sld [smem:[#allocation5 + $0x2]]
    %s384 = scalar_lea.vmem [#allocation15], %s382
    %v385 = vld [vmem:[%s384] sm:$0x1]
    %s386 = scalar_lea.vmem [#allocation15], %s383
    %v387 = vld [vmem:[%s386] sm:$0x1]
    %s388 = scalar_lea.vmem [#allocation14], %s382
    %v389 = vld [vmem:[%s388] sm:$0x1]
    %s390 = scalar_lea.vmem [#allocation14], %s383
    %v391 = vld [vmem:[%s390] sm:$0x1]
    %v392 = vld [vmem:[#allocation2 + $0x2] sm:$0x1]
    %v394 = vsel %vm100, %v385, 0
    %396 = vmatpush.msra.mxu0 0.0
    %397 = vmatpush.msra.mxu0 0.0
    %398 = vmatpush.msra.mxu0 0.0
    %399 = vmatpush.msra.mxu0 0.0
    %400 = vmatpush.msra.mxu0 0.0
    %401 = vmatpush.msra.mxu0 0.0
    %402 = vmatpush.msra.mxu0 0.0
    %403 = vmatpush.msra.mxu0 0.0
    %404 = vmatpush.msra.mxu0 0.0
    %405 = vmatpush.msra.mxu0 0.0
    %406 = vmatpush.msra.mxu0 0.0
    %407 = vmatpush.msra.mxu0 0.0
    %408 = vmatpush.msra.mxu0 %v142
    %409 = vmatpush.msra.mxu0 %v141
    %410 = vmatpush.msra.mxu0 %v140
    %411 = vmatpush.msra.mxu0 %v139
    %412 = vmatmul.f32.gmra.mxu0 %v394
    %v413 = vpop.f32.mrf.mxu0
    %v414 = vadd.f32 0.0, %v413
    %415 = vdwg.mxu0
    %v416 = vadd.f32 %v392, %v414
    %v418 = vsel %vm100, %v387, 0
    %420 = vmatpush.msra.mxu0 0.0
    %421 = vmatpush.msra.mxu0 0.0
    %422 = vmatpush.msra.mxu0 0.0
    %423 = vmatpush.msra.mxu0 0.0
    %424 = vmatpush.msra.mxu0 0.0
    %425 = vmatpush.msra.mxu0 0.0
    %426 = vmatpush.msra.mxu0 0.0
    %427 = vmatpush.msra.mxu0 0.0
    %428 = vmatpush.msra.mxu0 0.0
    %429 = vmatpush.msra.mxu0 0.0
    %430 = vmatpush.msra.mxu0 0.0
    %431 = vmatpush.msra.mxu0 0.0
    %432 = vmatpush.msra.mxu0 %v146
    %433 = vmatpush.msra.mxu0 %v145
    %434 = vmatpush.msra.mxu0 %v144
    %435 = vmatpush.msra.mxu0 %v143
    %436 = vmatmul.f32.gmra.mxu0 %v418
    %v437 = vpop.f32.mrf.mxu0
    %v438 = vadd.f32 0.0, %v437
    %439 = vdwg.mxu0
    %v440 = vadd.f32 %v416, %v438
    %v441 = vxor.u32 %v440, 2147483648
    %v442 = vmul.f32 %v441, 1.442695
    %v443 = vpow.pop %v442
    %v444 = vadd.f32 %v443, 1.0
    %v445 = vrcp.pop %v444
    %v446 = vmul.f32 %v444, %v445
    %v447 = vsub.f32 1.0, %v446
    %v448 = vmul.f32 %v445, %v447
    %v449 = vadd.f32 %v445, %v448
    %vm450 = vweird.f32 %v444
    %vm451 = vweird.f32 %v445
    %vm452 = vmor %vm450, %vm451
    %v453 = vsel %vm452, %v445, %v449
    %v454 = vand.u32 2147483647, %v444
    %vm455 = vcmp.eq.f32.partialorder %v454, 8.507059e+37
    %v456 = vand.u32 %v444, 2147483648
    %v457 = vor.u32 1.1754944e-38, %v456
    %v458 = vsel %vm455, %v457, %v453
    %v459 = vmul.f32 1.0, %v458
    %v460 = vtanh.pop %v440
    %v461 = vsel %vm138, %v459, %v460
    %463 = vrot.lane.b32.xlu0 %v461, 32
    %v464 = vpop.permute.xlu0 %463
    %v466 = vmul.f32 %v461, %v464
    %468 = vrot.lane.b32.xlu0 %v389, 32
    %v469 = vpop.permute.xlu0 %468
    %v471 = vmul.f32 %v461, %v469
    %473 = vrot.lane.b32.xlu0 %v471, 96
    %v474 = vpop.permute.xlu0 %473
    %v476 = vadd.f32 %v466, %v474
    %478 = vrot.lane.b32.xlu0 %v391, 32
    %v479 = vpop.permute.xlu0 %478
    %v481 = vmul.f32 %v461, %v479
    %483 = vrot.lane.b32.xlu0 %v481, 96
    %v484 = vpop.permute.xlu0 %483
    %v486 = vadd.f32 %v476, %v484
    %v487 = vtanh.pop %v486
    %489 = vrot.lane.b32.xlu0 %v487, 64
    %v490 = vpop.permute.xlu0 %489
    %v492 = vmul.f32 %v461, %v490
    %493 = vst.msk [vmem:[#allocation14 + $0x2] sm:$0x1] %vm258, %v486
    %495 = vrot.lane.b32.xlu0 %v492, 64
    %v496 = vpop.permute.xlu0 %495
    %498 = vst.msk [vmem:[#allocation15 + $0x2] sm:$0x1] %vm258, %v496
    %s499 = sld [smem:[#allocation4 + $0x3]]
    %s500 = sld [smem:[#allocation5 + $0x3]]
    %s501 = scalar_lea.vmem [#allocation15], %s499
    %v502 = vld [vmem:[%s501] sm:$0x1]
    %s503 = scalar_lea.vmem [#allocation15], %s500
    %v504 = vld [vmem:[%s503] sm:$0x1]
    %s505 = scalar_lea.vmem [#allocation14], %s499
    %v506 = vld [vmem:[%s505] sm:$0x1]
    %s507 = scalar_lea.vmem [#allocation14], %s500
    %v508 = vld [vmem:[%s507] sm:$0x1]
    %v509 = vld [vmem:[#allocation2 + $0x3] sm:$0x1]
    %v511 = vsel %vm100, %v502, 0
    %513 = vmatpush.msra.mxu0 0.0
    %514 = vmatpush.msra.mxu0 0.0
    %515 = vmatpush.msra.mxu0 0.0
    %516 = vmatpush.msra.mxu0 0.0
    %517 = vmatpush.msra.mxu0 0.0
    %518 = vmatpush.msra.mxu0 0.0
    %519 = vmatpush.msra.mxu0 0.0
    %520 = vmatpush.msra.mxu0 0.0
    %521 = vmatpush.msra.mxu0 0.0
    %522 = vmatpush.msra.mxu0 0.0
    %523 = vmatpush.msra.mxu0 0.0
    %524 = vmatpush.msra.mxu0 0.0
    %525 = vmatpush.msra.mxu0 %v142
    %526 = vmatpush.msra.mxu0 %v141
    %527 = vmatpush.msra.mxu0 %v140
    %528 = vmatpush.msra.mxu0 %v139
    %529 = vmatmul.f32.gmra.mxu0 %v511
    %v530 = vpop.f32.mrf.mxu0
    %v531 = vadd.f32 0.0, %v530
    %532 = vdwg.mxu0
    %v533 = vadd.f32 %v509, %v531
    %v535 = vsel %vm100, %v504, 0
    %537 = vmatpush.msra.mxu0 0.0
    %538 = vmatpush.msra.mxu0 0.0
    %539 = vmatpush.msra.mxu0 0.0
    %540 = vmatpush.msra.mxu0 0.0
    %541 = vmatpush.msra.mxu0 0.0
    %542 = vmatpush.msra.mxu0 0.0
    %543 = vmatpush.msra.mxu0 0.0
    %544 = vmatpush.msra.mxu0 0.0
    %545 = vmatpush.msra.mxu0 0.0
    %546 = vmatpush.msra.mxu0 0.0
    %547 = vmatpush.msra.mxu0 0.0
    %548 = vmatpush.msra.mxu0 0.0
    %549 = vmatpush.msra.mxu0 %v146
    %550 = vmatpush.msra.mxu0 %v145
    %551 = vmatpush.msra.mxu0 %v144
    %552 = vmatpush.msra.mxu0 %v143
    %553 = vmatmul.f32.gmra.mxu0 %v535
    %v554 = vpop.f32.mrf.mxu0
    %v555 = vadd.f32 0.0, %v554
    %556 = vdwg.mxu0
    %v557 = vadd.f32 %v533, %v555
    %v558 = vxor.u32 %v557, 2147483648
    %v559 = vmul.f32 %v558, 1.442695
    %v560 = vpow.pop %v559
    %v561 = vadd.f32 %v560, 1.0
    %v562 = vrcp.pop %v561
    %v563 = vmul.f32 %v561, %v562
    %v564 = vsub.f32 1.0, %v563
    %v565 = vmul.f32 %v562, %v564
    %v566 = vadd.f32 %v562, %v565
    %vm567 = vweird.f32 %v561
    %vm568 = vweird.f32 %v562
    %vm569 = vmor %vm567, %vm568
    %v570 = vsel %vm569, %v562, %v566
    %v571 = vand.u32 2147483647, %v561
    %vm572 = vcmp.eq.f32.partialorder %v571, 8.507059e+37
    %v573 = vand.u32 %v561, 2147483648
    %v574 = vor.u32 1.1754944e-38, %v573
    %v575 = vsel %vm572, %v574, %v570
    %v576 = vmul.f32 1.0, %v575
    %v577 = vtanh.pop %v557
    %v578 = vsel %vm138, %v576, %v577
    %580 = vrot.lane.b32.xlu0 %v578, 32
    %v581 = vpop.permute.xlu0 %580
    %v583 = vmul.f32 %v578, %v581
    %585 = vrot.lane.b32.xlu0 %v506, 32
    %v586 = vpop.permute.xlu0 %585
    %v588 = vmul.f32 %v578, %v586
    %590 = vrot.lane.b32.xlu0 %v588, 96
    %v591 = vpop.permute.xlu0 %590
    %v593 = vadd.f32 %v583, %v591
    %595 = vrot.lane.b32.xlu0 %v508, 32
    %v596 = vpop.permute.xlu0 %595
    %v598 = vmul.f32 %v578, %v596
    %600 = vrot.lane.b32.xlu0 %v598, 96
    %v601 = vpop.permute.xlu0 %600
    %v603 = vadd.f32 %v593, %v601
    %v604 = vtanh.pop %v603
    %606 = vrot.lane.b32.xlu0 %v604, 64
    %v607 = vpop.permute.xlu0 %606
    %v609 = vmul.f32 %v578, %v607
    %610 = vst.msk [vmem:[#allocation14 + $0x3] sm:$0x1] %vm258, %v603
    %612 = vrot.lane.b32.xlu0 %v609, 64
    %v613 = vpop.permute.xlu0 %612
    %615 = vst.msk [vmem:[#allocation15 + $0x3] sm:$0x1] %vm258, %v613
    %s616 = sld [smem:[#allocation4 + $0x4]]
    %s617 = sld [smem:[#allocation5 + $0x4]]
    %s618 = scalar_lea.vmem [#allocation15], %s616
    %v619 = vld [vmem:[%s618] sm:$0x1]
    %s620 = scalar_lea.vmem [#allocation15], %s617
    %v621 = vld [vmem:[%s620] sm:$0x1]
    %s622 = scalar_lea.vmem [#allocation14], %s616
    %v623 = vld [vmem:[%s622] sm:$0x1]
    %s624 = scalar_lea.vmem [#allocation14], %s617
    %v625 = vld [vmem:[%s624] sm:$0x1]
    %v626 = vld [vmem:[#allocation2 + $0x4] sm:$0x1]
    %v628 = vsel %vm100, %v619, 0
    %630 = vmatpush.msra.mxu0 0.0
    %631 = vmatpush.msra.mxu0 0.0
    %632 = vmatpush.msra.mxu0 0.0
    %633 = vmatpush.msra.mxu0 0.0
    %634 = vmatpush.msra.mxu0 0.0
    %635 = vmatpush.msra.mxu0 0.0
    %636 = vmatpush.msra.mxu0 0.0
    %637 = vmatpush.msra.mxu0 0.0
    %638 = vmatpush.msra.mxu0 0.0
    %639 = vmatpush.msra.mxu0 0.0
    %640 = vmatpush.msra.mxu0 0.0
    %641 = vmatpush.msra.mxu0 0.0
    %642 = vmatpush.msra.mxu0 %v142
    %643 = vmatpush.msra.mxu0 %v141
    %644 = vmatpush.msra.mxu0 %v140
    %645 = vmatpush.msra.mxu0 %v139
    %646 = vmatmul.f32.gmra.mxu0 %v628
    %v647 = vpop.f32.mrf.mxu0
    %v648 = vadd.f32 0.0, %v647
    %649 = vdwg.mxu0
    %v650 = vadd.f32 %v626, %v648
    %v652 = vsel %vm100, %v621, 0
    %654 = vmatpush.msra.mxu0 0.0
    %655 = vmatpush.msra.mxu0 0.0
    %656 = vmatpush.msra.mxu0 0.0
    %657 = vmatpush.msra.mxu0 0.0
    %658 = vmatpush.msra.mxu0 0.0
    %659 = vmatpush.msra.mxu0 0.0
    %660 = vmatpush.msra.mxu0 0.0
    %661 = vmatpush.msra.mxu0 0.0
    %662 = vmatpush.msra.mxu0 0.0
    %663 = vmatpush.msra.mxu0 0.0
    %664 = vmatpush.msra.mxu0 0.0
    %665 = vmatpush.msra.mxu0 0.0
    %666 = vmatpush.msra.mxu0 %v146
    %667 = vmatpush.msra.mxu0 %v145
    %668 = vmatpush.msra.mxu0 %v144
    %669 = vmatpush.msra.mxu0 %v143
    %670 = vmatmul.f32.gmra.mxu0 %v652
    %v671 = vpop.f32.mrf.mxu0
    %v672 = vadd.f32 0.0, %v671
    %673 = vdwg.mxu0
    %v674 = vadd.f32 %v650, %v672
    %v675 = vxor.u32 %v674, 2147483648
    %v676 = vmul.f32 %v675, 1.442695
    %v677 = vpow.pop %v676
    %v678 = vadd.f32 %v677, 1.0
    %v679 = vrcp.pop %v678
    %v680 = vmul.f32 %v678, %v679
    %v681 = vsub.f32 1.0, %v680
    %v682 = vmul.f32 %v679, %v681
    %v683 = vadd.f32 %v679, %v682
    %vm684 = vweird.f32 %v678
    %vm685 = vweird.f32 %v679
    %vm686 = vmor %vm684, %vm685
    %v687 = vsel %vm686, %v679, %v683
    %v688 = vand.u32 2147483647, %v678
    %vm689 = vcmp.eq.f32.partialorder %v688, 8.507059e+37
    %v690 = vand.u32 %v678, 2147483648
    %v691 = vor.u32 1.1754944e-38, %v690
    %v692 = vsel %vm689, %v691, %v687
    %v693 = vmul.f32 1.0, %v692
    %v694 = vtanh.pop %v674
    %v695 = vsel %vm138, %v693, %v694
    %697 = vrot.lane.b32.xlu0 %v695, 32
    %v698 = vpop.permute.xlu0 %697
    %v700 = vmul.f32 %v695, %v698
    %702 = vrot.lane.b32.xlu0 %v623, 32
    %v703 = vpop.permute.xlu0 %702
    %v705 = vmul.f32 %v695, %v703
    %707 = vrot.lane.b32.xlu0 %v705, 96
    %v708 = vpop.permute.xlu0 %707
    %v710 = vadd.f32 %v700, %v708
    %712 = vrot.lane.b32.xlu0 %v625, 32
    %v713 = vpop.permute.xlu0 %712
    %v715 = vmul.f32 %v695, %v713
    %717 = vrot.lane.b32.xlu0 %v715, 96
    %v718 = vpop.permute.xlu0 %717
    %v720 = vadd.f32 %v710, %v718
    %v721 = vtanh.pop %v720
    %723 = vrot.lane.b32.xlu0 %v721, 64
    %v724 = vpop.permute.xlu0 %723
    %v726 = vmul.f32 %v695, %v724
    %727 = vst.msk [vmem:[#allocation14 + $0x4] sm:$0x1] %vm258, %v720
    %729 = vrot.lane.b32.xlu0 %v726, 64
    %v730 = vpop.permute.xlu0 %729
    %732 = vst.msk [vmem:[#allocation15 + $0x4] sm:$0x1] %vm258, %v730
    %s733 = sld [smem:[#allocation4 + $0x5]]
    %s734 = sld [smem:[#allocation5 + $0x5]]
    %s735 = scalar_lea.vmem [#allocation15], %s733
    %v736 = vld [vmem:[%s735] sm:$0x1]
    %s737 = scalar_lea.vmem [#allocation15], %s734
    %v738 = vld [vmem:[%s737] sm:$0x1]
    %s739 = scalar_lea.vmem [#allocation14], %s733
    %v740 = vld [vmem:[%s739] sm:$0x1]
    %s741 = scalar_lea.vmem [#allocation14], %s734
    %v742 = vld [vmem:[%s741] sm:$0x1]
    %v743 = vld [vmem:[#allocation2 + $0x5] sm:$0x1]
    %v745 = vsel %vm100, %v736, 0
    %747 = vmatpush.msra.mxu0 0.0
    %748 = vmatpush.msra.mxu0 0.0
    %749 = vmatpush.msra.mxu0 0.0
    %750 = vmatpush.msra.mxu0 0.0
    %751 = vmatpush.msra.mxu0 0.0
    %752 = vmatpush.msra.mxu0 0.0
    %753 = vmatpush.msra.mxu0 0.0
    %754 = vmatpush.msra.mxu0 0.0
    %755 = vmatpush.msra.mxu0 0.0
    %756 = vmatpush.msra.mxu0 0.0
    %757 = vmatpush.msra.mxu0 0.0
    %758 = vmatpush.msra.mxu0 0.0
    %759 = vmatpush.msra.mxu0 %v142
    %760 = vmatpush.msra.mxu0 %v141
    %761 = vmatpush.msra.mxu0 %v140
    %762 = vmatpush.msra.mxu0 %v139
    %763 = vmatmul.f32.gmra.mxu0 %v745
    %v764 = vpop.f32.mrf.mxu0
    %v765 = vadd.f32 0.0, %v764
    %766 = vdwg.mxu0
    %v767 = vadd.f32 %v743, %v765
    %v769 = vsel %vm100, %v738, 0
    %771 = vmatpush.msra.mxu0 0.0
    %772 = vmatpush.msra.mxu0 0.0
    %773 = vmatpush.msra.mxu0 0.0
    %774 = vmatpush.msra.mxu0 0.0
    %775 = vmatpush.msra.mxu0 0.0
    %776 = vmatpush.msra.mxu0 0.0
    %777 = vmatpush.msra.mxu0 0.0
    %778 = vmatpush.msra.mxu0 0.0
    %779 = vmatpush.msra.mxu0 0.0
    %780 = vmatpush.msra.mxu0 0.0
    %781 = vmatpush.msra.mxu0 0.0
    %782 = vmatpush.msra.mxu0 0.0
    %783 = vmatpush.msra.mxu0 %v146
    %784 = vmatpush.msra.mxu0 %v145
    %785 = vmatpush.msra.mxu0 %v144
    %786 = vmatpush.msra.mxu0 %v143
    %787 = vmatmul.f32.gmra.mxu0 %v769
    %v788 = vpop.f32.mrf.mxu0
    %v789 = vadd.f32 0.0, %v788
    %790 = vdwg.mxu0
    %v791 = vadd.f32 %v767, %v789
    %v792 = vxor.u32 %v791, 2147483648
    %v793 = vmul.f32 %v792, 1.442695
    %v794 = vpow.pop %v793
    %v795 = vadd.f32 %v794, 1.0
    %v796 = vrcp.pop %v795
    %v797 = vmul.f32 %v795, %v796
    %v798 = vsub.f32 1.0, %v797
    %v799 = vmul.f32 %v796, %v798
    %v800 = vadd.f32 %v796, %v799
    %vm801 = vweird.f32 %v795
    %vm802 = vweird.f32 %v796
    %vm803 = vmor %vm801, %vm802
    %v804 = vsel %vm803, %v796, %v800
    %v805 = vand.u32 2147483647, %v795
    %vm806 = vcmp.eq.f32.partialorder %v805, 8.507059e+37
    %v807 = vand.u32 %v795, 2147483648
    %v808 = vor.u32 1.1754944e-38, %v807
    %v809 = vsel %vm806, %v808, %v804
    %v810 = vmul.f32 1.0, %v809
    %v811 = vtanh.pop %v791
    %v812 = vsel %vm138, %v810, %v811
    %814 = vrot.lane.b32.xlu0 %v812, 32
    %v815 = vpop.permute.xlu0 %814
    %v817 = vmul.f32 %v812, %v815
    %819 = vrot.lane.b32.xlu0 %v740, 32
    %v820 = vpop.permute.xlu0 %819
    %v822 = vmul.f32 %v812, %v820
    %824 = vrot.lane.b32.xlu0 %v822, 96
    %v825 = vpop.permute.xlu0 %824
    %v827 = vadd.f32 %v817, %v825
    %829 = vrot.lane.b32.xlu0 %v742, 32
    %v830 = vpop.permute.xlu0 %829
    %v832 = vmul.f32 %v812, %v830
    %834 = vrot.lane.b32.xlu0 %v832, 96
    %v835 = vpop.permute.xlu0 %834
    %v837 = vadd.f32 %v827, %v835
    %v838 = vtanh.pop %v837
    %840 = vrot.lane.b32.xlu0 %v838, 64
    %v841 = vpop.permute.xlu0 %840
    %v843 = vmul.f32 %v812, %v841
    %844 = vst.msk [vmem:[#allocation14 + $0x5] sm:$0x1] %vm258, %v837
    %846 = vrot.lane.b32.xlu0 %v843, 64
    %v847 = vpop.permute.xlu0 %846
    %849 = vst.msk [vmem:[#allocation15 + $0x5] sm:$0x1] %vm258, %v847
    %s850 = sld [smem:[#allocation4 + $0x6]]
    %s851 = sld [smem:[#allocation5 + $0x6]]
    %s852 = scalar_lea.vmem [#allocation15], %s850
    %v853 = vld [vmem:[%s852] sm:$0x1]
    %s854 = scalar_lea.vmem [#allocation15], %s851
    %v855 = vld [vmem:[%s854] sm:$0x1]
    %s856 = scalar_lea.vmem [#allocation14], %s850
    %v857 = vld [vmem:[%s856] sm:$0x1]
    %s858 = scalar_lea.vmem [#allocation14], %s851
    %v859 = vld [vmem:[%s858] sm:$0x1]
    %v860 = vld [vmem:[#allocation2 + $0x6] sm:$0x1]
    %v862 = vsel %vm100, %v853, 0
    %864 = vmatpush.msra.mxu0 0.0
    %865 = vmatpush.msra.mxu0 0.0
    %866 = vmatpush.msra.mxu0 0.0
    %867 = vmatpush.msra.mxu0 0.0
    %868 = vmatpush.msra.mxu0 0.0
    %869 = vmatpush.msra.mxu0 0.0
    %870 = vmatpush.msra.mxu0 0.0
    %871 = vmatpush.msra.mxu0 0.0
    %872 = vmatpush.msra.mxu0 0.0
    %873 = vmatpush.msra.mxu0 0.0
    %874 = vmatpush.msra.mxu0 0.0
    %875 = vmatpush.msra.mxu0 0.0
    %876 = vmatpush.msra.mxu0 %v142
    %877 = vmatpush.msra.mxu0 %v141
    %878 = vmatpush.msra.mxu0 %v140
    %879 = vmatpush.msra.mxu0 %v139
    %880 = vmatmul.f32.gmra.mxu0 %v862
    %v881 = vpop.f32.mrf.mxu0
    %v882 = vadd.f32 0.0, %v881
    %883 = vdwg.mxu0
    %v884 = vadd.f32 %v860, %v882
    %v886 = vsel %vm100, %v855, 0
    %888 = vmatpush.msra.mxu0 0.0
    %889 = vmatpush.msra.mxu0 0.0
    %890 = vmatpush.msra.mxu0 0.0
    %891 = vmatpush.msra.mxu0 0.0
    %892 = vmatpush.msra.mxu0 0.0
    %893 = vmatpush.msra.mxu0 0.0
    %894 = vmatpush.msra.mxu0 0.0
    %895 = vmatpush.msra.mxu0 0.0
    %896 = vmatpush.msra.mxu0 0.0
    %897 = vmatpush.msra.mxu0 0.0
    %898 = vmatpush.msra.mxu0 0.0
    %899 = vmatpush.msra.mxu0 0.0
    %900 = vmatpush.msra.mxu0 %v146
    %901 = vmatpush.msra.mxu0 %v145
    %902 = vmatpush.msra.mxu0 %v144
    %903 = vmatpush.msra.mxu0 %v143
    %904 = vmatmul.f32.gmra.mxu0 %v886
    %v905 = vpop.f32.mrf.mxu0
    %v906 = vadd.f32 0.0, %v905
    %907 = vdwg.mxu0
    %v908 = vadd.f32 %v884, %v906
    %v909 = vxor.u32 %v908, 2147483648
    %v910 = vmul.f32 %v909, 1.442695
    %v911 = vpow.pop %v910
    %v912 = vadd.f32 %v911, 1.0
    %v913 = vrcp.pop %v912
    %v914 = vmul.f32 %v912, %v913
    %v915 = vsub.f32 1.0, %v914
    %v916 = vmul.f32 %v913, %v915
    %v917 = vadd.f32 %v913, %v916
    %vm918 = vweird.f32 %v912
    %vm919 = vweird.f32 %v913
    %vm920 = vmor %vm918, %vm919
    %v921 = vsel %vm920, %v913, %v917
    %v922 = vand.u32 2147483647, %v912
    %vm923 = vcmp.eq.f32.partialorder %v922, 8.507059e+37
    %v924 = vand.u32 %v912, 2147483648
    %v925 = vor.u32 1.1754944e-38, %v924
    %v926 = vsel %vm923, %v925, %v921
    %v927 = vmul.f32 1.0, %v926
    %v928 = vtanh.pop %v908
    %v929 = vsel %vm138, %v927, %v928
    %931 = vrot.lane.b32.xlu0 %v929, 32
    %v932 = vpop.permute.xlu0 %931
    %v934 = vmul.f32 %v929, %v932
    %936 = vrot.lane.b32.xlu0 %v857, 32
    %v937 = vpop.permute.xlu0 %936
    %v939 = vmul.f32 %v929, %v937
    %941 = vrot.lane.b32.xlu0 %v939, 96
    %v942 = vpop.permute.xlu0 %941
    %v944 = vadd.f32 %v934, %v942
    %946 = vrot.lane.b32.xlu0 %v859, 32
    %v947 = vpop.permute.xlu0 %946
    %v949 = vmul.f32 %v929, %v947
    %951 = vrot.lane.b32.xlu0 %v949, 96
    %v952 = vpop.permute.xlu0 %951
    %v954 = vadd.f32 %v944, %v952
    %v955 = vtanh.pop %v954
    %957 = vrot.lane.b32.xlu0 %v955, 64
    %v958 = vpop.permute.xlu0 %957
    %v960 = vmul.f32 %v929, %v958
    %961 = vst.msk [vmem:[#allocation14 + $0x6] sm:$0x1] %vm258, %v954
    %963 = vrot.lane.b32.xlu0 %v960, 64
    %v964 = vpop.permute.xlu0 %963
    %966 = vst.msk [vmem:[#allocation15 + $0x6] sm:$0x1] %vm258, %v964
    // Predicated region
    $region38: #{tpu_custom_call.1} parent=1 // pred_check
      _
    $region39: #{tpu_custom_call.1} parent=1 // pred_check_branch
      %968 = sbr.rel (0) target = $region41
    $region40: #{tpu_custom_call.1} parent=1 // pred_region
      %970 = vsyncadd [#allocation8], 0
      %s972 = sshll.u32 [#allocation14], 4
      %s973 = int_to_ptr.vmem [resolvable:$true] %s972
      %s974 = sshll.u32 %s7, 4
      %s975 = int_to_ptr.hbm [resolvable:$true] %s974
      %977 = dma.vmem_to_hbm [thread:$0]  %s973, 128, %s975, [#allocation8]
    $region41: #{tpu_custom_call.1} parent=1 // pred_fallthru
      _
    // Predicated region
    $region42: #{tpu_custom_call.1} parent=1 // pred_check
      _
    $region43: #{tpu_custom_call.1} parent=1 // pred_check_branch
      %979 = sbr.rel (0) target = $region45
    $region44: #{tpu_custom_call.1} parent=1 // pred_region
      %981 = vsyncadd [#allocation16], 0
      %s983 = sshll.u32 [#allocation15], 4
      %s984 = int_to_ptr.vmem [resolvable:$true] %s983
      %s985 = sshll.u32 %s8, 4
      %s986 = int_to_ptr.hbm [resolvable:$true] %s985
      %988 = dma.vmem_to_hbm [thread:$0]  %s984, 128, %s986, [#allocation16]
    $region45: #{tpu_custom_call.1} parent=1 // pred_fallthru
      _
    // Predicated region
    $region46: #{tpu_custom_call.1} parent=1 // pred_check
      _
    $region47: #{tpu_custom_call.1} parent=1 // pred_check_branch
      %990 = sbr.rel (0) target = $region49
    $region48: #{tpu_custom_call.1} parent=1 // pred_region
      %992 = dma.done [#allocation8], 128
    $region49: #{tpu_custom_call.1} parent=1 // pred_fallthru
      _
    // Predicated region
    $region50: #{tpu_custom_call.1} parent=1 // pred_check
      _
    $region51: #{tpu_custom_call.1} parent=1 // pred_check_branch
      %994 = sbr.rel (0) target = $region53
    $region52: #{tpu_custom_call.1} parent=1 // pred_region
      %996 = dma.done [#allocation16], 128
    $region53: #{tpu_custom_call.1} parent=1 // pred_fallthru
      _
    %997 = vsyncpa [#allocation7], 1
    %998 = vsyncpa [#allocation10], 1
    %999 = vsyncpa [#allocation13], 1
    %1000 = vsyncpa [#allocation8], 1
    %1001 = vsyncpa [#allocation16], 1

</llo_original>
